<compile_context>
chip_gen: v6e
topology: v6e:2x2x1
jax: 0.10.0
libtpu: 0.0.40
codegen_flags: <defaults>
</compile_context>

<pallas_src>
import functools

import jax
import jax.numpy as jnp
from jax import lax
from jax.experimental import pallas as pl
from jax.experimental.pallas import tpu as pltpu


def flow_head_kernel(x_ref, w1_ref, b1_ref, w2_ref, b2_ref, ml_ref, mr_ref,
                     out_ref, *, W):
    """One batch element: conv2(relu(conv1(x))), channel-major, flat spatial.

    x_ref  : (1, Cin, HW)    f32   NCHW input, spatial flattened (HW = H*W)
    w1_ref : (9, Chid, Cin)  bf16  per-tap conv1 weights, k = kh*3 + kw
    b1_ref : (Chid, 1)       f32
    w2_ref : (9, Cp, Chid)   bf16  per-tap conv2 weights (Cp = Cout padded to 8)
    b2_ref : (Cp, 1)         f32
    ml_ref : (1, HW)         bf16  0 where column == 0     (for dw = -1 taps)
    mr_ref : (1, HW)         bf16  0 where column == W-1   (for dw = +1 taps)
    out_ref: (1, Cp, HW)     f32   flattened NCHW output (lane-dense rows)
    """
    HW = x_ref.shape[2]
    Cin = x_ref.shape[1]
    Chid = w1_ref.shape[1]

    xb = x_ref[0].astype(jnp.bfloat16)                      # (Cin, HW)

    # Hoisted edge masks (each reused by 3 taps per conv).
    ml1 = jnp.broadcast_to(ml_ref[...], (Cin, HW))
    mr1 = jnp.broadcast_to(mr_ref[...], (Cin, HW))
    ml2 = jnp.broadcast_to(ml_ref[...], (Chid, HW))
    mr2 = jnp.broadcast_to(mr_ref[...], (Chid, HW))

    def shift_zero(v, s):
        # w[:, p] = v[:, p + s] for 0 <= p + s < HW, else 0.
        # (Handles vertical out-of-image taps via the flat-index overflow.)
        c = v.shape[0]
        if s == 0:
            return v
        if s > 0:
            pad = jnp.zeros((c, s), dtype=v.dtype)
            return jnp.concatenate([v[:, s:], pad], axis=1)
        pad = jnp.zeros((c, -s), dtype=v.dtype)
        return jnp.concatenate([pad, v[:, :HW + s]], axis=1)

    def conv3x3(src, w_ref, ml, mr):
        # 9 accumulating MXU matmuls: acc(Co,HW) += W_k(Co,Ci) @ win(Ci,HW).
        acc = None
        for k in range(9):
            dh, dw = k // 3 - 1, k % 3 - 1
            win = shift_zero(src, dh * W + dw)
            if dw == 1:
                win = win * mr                    # kill wrapped column W-1
            elif dw == -1:
                win = win * ml                    # kill wrapped column 0
            part = jnp.dot(w_ref[k], win, preferred_element_type=jnp.float32)
            acc = part if acc is None else acc + part
        return acc

    # conv1 + bias + ReLU + bf16 cast fused; hidden activation stays on-chip.
    h = jnp.maximum(conv3x3(xb, w1_ref, ml1, mr1) + b1_ref[...], 0.0)
    hb = h.astype(jnp.bfloat16)                              # (Chid, HW)

    # conv2 + bias; result is already channel-major and lane-dense.
    y = conv3x3(hb, w2_ref, ml2, mr2) + b2_ref[...]          # (Cp, HW) f32
    out_ref[0] = y.astype(out_ref.dtype)


@jax.jit
def flow_head_pallas(x_nchw, w1_oihw, b1, w2_oihw, b2):
    """FlowHead forward: conv2(relu(conv1(x))).  x is NCHW f32, returns NCHW f32."""
    B, Cin, H, W = x_nchw.shape
    Chid = w1_oihw.shape[0]
    Cout = w2_oihw.shape[0]
    HW = H * W
    CP = ((Cout + 7) // 8) * 8           # pad output channels to a full sublane

    # Input: free contiguous reshape only -- no transpose, no cast pass in HBM.
    x_flat = x_nchw.reshape(B, Cin, HW)

    # Weights: OIHW -> (kh*3+kw, O, I), bf16 (tiny one-off transforms).
    w1r = jnp.transpose(w1_oihw, (2, 3, 0, 1)).reshape(9, Chid, Cin)
    w1r = w1r.astype(jnp.bfloat16)
    w2r = jnp.transpose(w2_oihw, (2, 3, 0, 1)).reshape(9, Cout, Chid)
    w2p = jnp.zeros((9, CP, Chid), jnp.bfloat16).at[:, :Cout, :].set(
        w2r.astype(jnp.bfloat16))
    b1r = b1.reshape(Chid, 1).astype(jnp.float32)
    b2p = jnp.zeros((CP, 1), jnp.float32).at[:Cout, :].set(
        b2.reshape(Cout, 1).astype(jnp.float32))

    # Column-edge masks for the +/-1 horizontal taps (zero the wrapped column).
    col = jnp.arange(HW, dtype=jnp.int32) % W
    mask_l = (col != 0).astype(jnp.bfloat16).reshape(1, HW)
    mask_r = (col != W - 1).astype(jnp.bfloat16).reshape(1, HW)

    kern = functools.partial(flow_head_kernel, W=W)

    flops = 2 * B * HW * 9 * (Cin * Chid + Chid * CP)
    bytes_accessed = (x_flat.size * 4 + B * CP * HW * 4
                      + w1r.size * 2 + w2p.size * 2
                      + (Chid + CP) * 4 + 2 * HW * 2)

    out = pl.pallas_call(
        kern,
        out_shape=jax.ShapeDtypeStruct((B, CP, HW), jnp.float32),
        grid_spec=pltpu.PrefetchScalarGridSpec(
            num_scalar_prefetch=0,
            grid=(B,),
            in_specs=[
                pl.BlockSpec((1, Cin, HW), lambda b: (b, 0, 0)),
                pl.BlockSpec((9, Chid, Cin), lambda b: (0, 0, 0)),   # resident
                pl.BlockSpec((Chid, 1), lambda b: (0, 0)),           # resident
                pl.BlockSpec((9, CP, Chid), lambda b: (0, 0, 0)),    # resident
                pl.BlockSpec((CP, 1), lambda b: (0, 0)),             # resident
                pl.BlockSpec((1, HW), lambda b: (0, 0)),             # resident
                pl.BlockSpec((1, HW), lambda b: (0, 0)),             # resident
            ],
            out_specs=pl.BlockSpec((1, CP, HW), lambda b: (b, 0, 0)),
        ),
        compiler_params=pltpu.CompilerParams(
            dimension_semantics=("parallel",),
            vmem_limit_bytes=48 * 1024 * 1024,
        ),
        cost_estimate=pl.CostEstimate(
            flops=flops, transcendentals=0, bytes_accessed=bytes_accessed),
    )(x_flat, w1r, b1r, w2p, b2p, mask_l, mask_r)

    # (B, CP, HW) -> slice the real channels (tiny) -> free reshape to NCHW.
    return out[:, :Cout, :].reshape(B, Cout, H, W)


def flow_head_reference(x_nchw, w1_oihw, b1, w2_oihw, b2):
    """Pure-JAX f32 reference using lax.conv (matches PyTorch semantics)."""
    dn = ("NCHW", "OIHW", "NCHW")
    h = lax.conv_general_dilated(
        x_nchw, w1_oihw, (1, 1), "SAME", dimension_numbers=dn,
        precision=lax.Precision.HIGHEST) + b1[None, :, None, None]
    h = jnp.maximum(h, 0.0)
    y = lax.conv_general_dilated(
        h, w2_oihw, (1, 1), "SAME", dimension_numbers=dn,
        precision=lax.Precision.HIGHEST) + b2[None, :, None, None]
    return y


if __name__ == "__main__":
    # Small, deterministic problem: input_dim=32, hidden_dim=64, B=2, 16x16.
    B, Cin, Chid, Cout, H, W = 2, 32, 64, 2, 16, 16

    key = jax.random.PRNGKey(0)
    kx, kw1, kb1, kw2, kb2 = jax.random.split(key, 5)

    x = jax.random.normal(kx, (B, Cin, H, W), dtype=jnp.float32)
    w1 = 0.05 * jax.random.normal(kw1, (Chid, Cin, 3, 3), dtype=jnp.float32)   # OIHW
    b1 = 0.05 * jax.random.normal(kb1, (Chid,), dtype=jnp.float32)
    w2 = 0.05 * jax.random.normal(kw2, (Cout, Chid, 3, 3), dtype=jnp.float32)  # OIHW
    b2 = 0.05 * jax.random.normal(kb2, (Cout,), dtype=jnp.float32)

    y = flow_head_pallas(x, w1, b1, w2, b2)
    y = jax.block_until_ready(y)

    y_ref = flow_head_reference(x, w1, b1, w2, b2)
    assert y.shape == (B, Cout, H, W), y.shape
    # bf16 matmuls with f32 accumulation -> relaxed tolerance vs. the f32 ref.
    assert jnp.allclose(y, y_ref, atol=2e-2, rtol=2e-2), float(
        jnp.max(jnp.abs(y - y_ref)))

    print("KERNEL_OK")
</pallas_src>

<mosaic_0001>
module attributes {stable_mosaic.version = 11 : i64} {
  func.func @flow_head_kernel(%arg0: i32, %arg1: memref<1x32x256xf32, #tpu.memory_space<vmem>>, %arg2: memref<9x64x32xbf16, #tpu.memory_space<vmem>>, %arg3: memref<64x1xf32, #tpu.memory_space<vmem>>, %arg4: memref<9x8x64xbf16, #tpu.memory_space<vmem>>, %arg5: memref<8x1xf32, #tpu.memory_space<vmem>>, %arg6: memref<1x256xbf16, #tpu.memory_space<vmem>>, %arg7: memref<1x256xbf16, #tpu.memory_space<vmem>>, %arg8: memref<1x8x256xf32, #tpu.memory_space<vmem>>) attributes {dimension_semantics = [#tpu.dimension_semantics<parallel>], iteration_bounds = array<i64: 2>, scalar_prefetch = 0 : i64, scratch_operands = 0 : i64, tpu.core_type = #tpu.core_type<tc>, window_params = [{transform_indices = @transform_0, window_bounds = array<i64: 1, 32, 256>}, {pipeline_mode = #tpu.pipeline_mode<synchronous>, transform_indices = @transform_1, window_bounds = array<i64: 9, 64, 32>}, {pipeline_mode = #tpu.pipeline_mode<synchronous>, transform_indices = @transform_2, window_bounds = array<i64: 64, 1>}, {pipeline_mode = #tpu.pipeline_mode<synchronous>, transform_indices = @transform_3, window_bounds = array<i64: 9, 8, 64>}, {pipeline_mode = #tpu.pipeline_mode<synchronous>, transform_indices = @transform_4, window_bounds = array<i64: 8, 1>}, {pipeline_mode = #tpu.pipeline_mode<synchronous>, transform_indices = @transform_5, window_bounds = array<i64: 1, 256>}, {pipeline_mode = #tpu.pipeline_mode<synchronous>, transform_indices = @transform_6, window_bounds = array<i64: 1, 256>}, {transform_indices = @transform_7, window_bounds = array<i64: 1, 8, 256>}]} {
    %c0 = arith.constant 0 : index
    %c0_0 = arith.constant 0 : index
    %c0_1 = arith.constant 0 : index
    %0 = vector.load %arg1[%c0, %c0_0, %c0_1] : memref<1x32x256xf32, #tpu.memory_space<vmem>>, vector<1x32x256xf32>
    %1 = vector.shape_cast %0 : vector<1x32x256xf32> to vector<32x256xf32>
    %2 = arith.truncf %1 : vector<32x256xf32> to vector<32x256xbf16>
    %c0_2 = arith.constant 0 : index
    %c0_3 = arith.constant 0 : index
    %3 = vector.load %arg6[%c0_2, %c0_3] : memref<1x256xbf16, #tpu.memory_space<vmem>>, vector<1x256xbf16>
    %4 = vector.shape_cast %3 : vector<1x256xbf16> to vector<1x256xbf16>
    %5 = vector.broadcast %4 : vector<1x256xbf16> to vector<32x256xbf16>
    %c0_4 = arith.constant 0 : index
    %c0_5 = arith.constant 0 : index
    %6 = vector.load %arg7[%c0_4, %c0_5] : memref<1x256xbf16, #tpu.memory_space<vmem>>, vector<1x256xbf16>
    %7 = vector.shape_cast %6 : vector<1x256xbf16> to vector<1x256xbf16>
    %8 = vector.broadcast %7 : vector<1x256xbf16> to vector<32x256xbf16>
    %c0_6 = arith.constant 0 : index
    %c0_7 = arith.constant 0 : index
    %9 = vector.load %arg6[%c0_6, %c0_7] : memref<1x256xbf16, #tpu.memory_space<vmem>>, vector<1x256xbf16>
    %10 = vector.shape_cast %9 : vector<1x256xbf16> to vector<1x256xbf16>
    %11 = vector.broadcast %10 : vector<1x256xbf16> to vector<64x256xbf16>
    %c0_8 = arith.constant 0 : index
    %c0_9 = arith.constant 0 : index
    %12 = vector.load %arg7[%c0_8, %c0_9] : memref<1x256xbf16, #tpu.memory_space<vmem>>, vector<1x256xbf16>
    %13 = vector.shape_cast %12 : vector<1x256xbf16> to vector<1x256xbf16>
    %14 = vector.broadcast %13 : vector<1x256xbf16> to vector<64x256xbf16>
    %cst = arith.constant 0.000000e+00 : bf16
    %15 = vector.broadcast %cst : bf16 to vector<32x17xbf16>
    %16 = vector.extract_strided_slice %2 {offsets = [0, 0], sizes = [32, 239], strides = [1, 1]} : vector<32x256xbf16> to vector<32x239xbf16>
    %17 = tpu.concatenate %15, %16 in 1 : vector<32x17xbf16>, vector<32x239xbf16> -> vector<32x256xbf16>
    %18 = arith.mulf %17, %5 : vector<32x256xbf16>
    %c0_10 = arith.constant 0 : index
    %c0_11 = arith.constant 0 : index
    %c0_12 = arith.constant 0 : index
    %19 = vector.load %arg2[%c0_10, %c0_11, %c0_12] : memref<9x64x32xbf16, #tpu.memory_space<vmem>>, vector<1x64x32xbf16>
    %20 = vector.shape_cast %19 : vector<1x64x32xbf16> to vector<64x32xbf16>
    %cst_13 = arith.constant dense<0.000000e+00> : vector<64x256xf32>
    %21 = tpu.matmul %20, %18, %cst_13 {dimension_numbers = #tpu.dot_dimension_numbers<[1], [0], [0], [1], [0, 0, 1, 1], [], []>} : vector<64x32xbf16>, vector<32x256xbf16>, vector<64x256xf32> -> vector<64x256xf32>
    %cst_14 = arith.constant 0.000000e+00 : bf16
    %22 = vector.broadcast %cst_14 : bf16 to vector<32x16xbf16>
    %23 = vector.extract_strided_slice %2 {offsets = [0, 0], sizes = [32, 240], strides = [1, 1]} : vector<32x256xbf16> to vector<32x240xbf16>
    %24 = tpu.concatenate %22, %23 in 1 : vector<32x16xbf16>, vector<32x240xbf16> -> vector<32x256xbf16>
    %c1 = arith.constant 1 : index
    %c0_15 = arith.constant 0 : index
    %c0_16 = arith.constant 0 : index
    %25 = vector.load %arg2[%c1, %c0_15, %c0_16] : memref<9x64x32xbf16, #tpu.memory_space<vmem>>, vector<1x64x32xbf16>
    %26 = vector.shape_cast %25 : vector<1x64x32xbf16> to vector<64x32xbf16>
    %cst_17 = arith.constant dense<0.000000e+00> : vector<64x256xf32>
    %27 = tpu.matmul %26, %24, %cst_17 {dimension_numbers = #tpu.dot_dimension_numbers<[1], [0], [0], [1], [0, 0, 1, 1], [], []>} : vector<64x32xbf16>, vector<32x256xbf16>, vector<64x256xf32> -> vector<64x256xf32>
    %28 = arith.addf %21, %27 : vector<64x256xf32>
    %cst_18 = arith.constant 0.000000e+00 : bf16
    %29 = vector.broadcast %cst_18 : bf16 to vector<32x15xbf16>
    %30 = vector.extract_strided_slice %2 {offsets = [0, 0], sizes = [32, 241], strides = [1, 1]} : vector<32x256xbf16> to vector<32x241xbf16>
    %31 = tpu.concatenate %29, %30 in 1 : vector<32x15xbf16>, vector<32x241xbf16> -> vector<32x256xbf16>
    %32 = arith.mulf %31, %8 : vector<32x256xbf16>
    %c2 = arith.constant 2 : index
    %c0_19 = arith.constant 0 : index
    %c0_20 = arith.constant 0 : index
    %33 = vector.load %arg2[%c2, %c0_19, %c0_20] : memref<9x64x32xbf16, #tpu.memory_space<vmem>>, vector<1x64x32xbf16>
    %34 = vector.shape_cast %33 : vector<1x64x32xbf16> to vector<64x32xbf16>
    %cst_21 = arith.constant dense<0.000000e+00> : vector<64x256xf32>
    %35 = tpu.matmul %34, %32, %cst_21 {dimension_numbers = #tpu.dot_dimension_numbers<[1], [0], [0], [1], [0, 0, 1, 1], [], []>} : vector<64x32xbf16>, vector<32x256xbf16>, vector<64x256xf32> -> vector<64x256xf32>
    %36 = arith.addf %28, %35 : vector<64x256xf32>
    %cst_22 = arith.constant 0.000000e+00 : bf16
    %37 = vector.broadcast %cst_22 : bf16 to vector<32x1xbf16>
    %38 = vector.extract_strided_slice %2 {offsets = [0, 0], sizes = [32, 255], strides = [1, 1]} : vector<32x256xbf16> to vector<32x255xbf16>
    %39 = tpu.concatenate %37, %38 in 1 : vector<32x1xbf16>, vector<32x255xbf16> -> vector<32x256xbf16>
    %40 = arith.mulf %39, %5 : vector<32x256xbf16>
    %c3 = arith.constant 3 : index
    %c0_23 = arith.constant 0 : index
    %c0_24 = arith.constant 0 : index
    %41 = vector.load %arg2[%c3, %c0_23, %c0_24] : memref<9x64x32xbf16, #tpu.memory_space<vmem>>, vector<1x64x32xbf16>
    %42 = vector.shape_cast %41 : vector<1x64x32xbf16> to vector<64x32xbf16>
    %cst_25 = arith.constant dense<0.000000e+00> : vector<64x256xf32>
    %43 = tpu.matmul %42, %40, %cst_25 {dimension_numbers = #tpu.dot_dimension_numbers<[1], [0], [0], [1], [0, 0, 1, 1], [], []>} : vector<64x32xbf16>, vector<32x256xbf16>, vector<64x256xf32> -> vector<64x256xf32>
    %44 = arith.addf %36, %43 : vector<64x256xf32>
    %c4 = arith.constant 4 : index
    %c0_26 = arith.constant 0 : index
    %c0_27 = arith.constant 0 : index
    %45 = vector.load %arg2[%c4, %c0_26, %c0_27] : memref<9x64x32xbf16, #tpu.memory_space<vmem>>, vector<1x64x32xbf16>
    %46 = vector.shape_cast %45 : vector<1x64x32xbf16> to vector<64x32xbf16>
    %cst_28 = arith.constant dense<0.000000e+00> : vector<64x256xf32>
    %47 = tpu.matmul %46, %2, %cst_28 {dimension_numbers = #tpu.dot_dimension_numbers<[1], [0], [0], [1], [0, 0, 1, 1], [], []>} : vector<64x32xbf16>, vector<32x256xbf16>, vector<64x256xf32> -> vector<64x256xf32>
    %48 = arith.addf %44, %47 : vector<64x256xf32>
    %cst_29 = arith.constant 0.000000e+00 : bf16
    %49 = vector.broadcast %cst_29 : bf16 to vector<32x1xbf16>
    %50 = vector.extract_strided_slice %2 {offsets = [0, 1], sizes = [32, 255], strides = [1, 1]} : vector<32x256xbf16> to vector<32x255xbf16>
    %51 = tpu.concatenate %50, %49 in 1 : vector<32x255xbf16>, vector<32x1xbf16> -> vector<32x256xbf16>
    %52 = arith.mulf %51, %8 : vector<32x256xbf16>
    %c5 = arith.constant 5 : index
    %c0_30 = arith.constant 0 : index
    %c0_31 = arith.constant 0 : index
    %53 = vector.load %arg2[%c5, %c0_30, %c0_31] : memref<9x64x32xbf16, #tpu.memory_space<vmem>>, vector<1x64x32xbf16>
    %54 = vector.shape_cast %53 : vector<1x64x32xbf16> to vector<64x32xbf16>
    %cst_32 = arith.constant dense<0.000000e+00> : vector<64x256xf32>
    %55 = tpu.matmul %54, %52, %cst_32 {dimension_numbers = #tpu.dot_dimension_numbers<[1], [0], [0], [1], [0, 0, 1, 1], [], []>} : vector<64x32xbf16>, vector<32x256xbf16>, vector<64x256xf32> -> vector<64x256xf32>
    %56 = arith.addf %48, %55 : vector<64x256xf32>
    %cst_33 = arith.constant 0.000000e+00 : bf16
    %57 = vector.broadcast %cst_33 : bf16 to vector<32x15xbf16>
    %58 = vector.extract_strided_slice %2 {offsets = [0, 15], sizes = [32, 241], strides = [1, 1]} : vector<32x256xbf16> to vector<32x241xbf16>
    %59 = tpu.concatenate %58, %57 in 1 : vector<32x241xbf16>, vector<32x15xbf16> -> vector<32x256xbf16>
    %60 = arith.mulf %59, %5 : vector<32x256xbf16>
    %c6 = arith.constant 6 : index
    %c0_34 = arith.constant 0 : index
    %c0_35 = arith.constant 0 : index
    %61 = vector.load %arg2[%c6, %c0_34, %c0_35] : memref<9x64x32xbf16, #tpu.memory_space<vmem>>, vector<1x64x32xbf16>
    %62 = vector.shape_cast %61 : vector<1x64x32xbf16> to vector<64x32xbf16>
    %cst_36 = arith.constant dense<0.000000e+00> : vector<64x256xf32>
    %63 = tpu.matmul %62, %60, %cst_36 {dimension_numbers = #tpu.dot_dimension_numbers<[1], [0], [0], [1], [0, 0, 1, 1], [], []>} : vector<64x32xbf16>, vector<32x256xbf16>, vector<64x256xf32> -> vector<64x256xf32>
    %64 = arith.addf %56, %63 : vector<64x256xf32>
    %cst_37 = arith.constant 0.000000e+00 : bf16
    %65 = vector.broadcast %cst_37 : bf16 to vector<32x16xbf16>
    %66 = vector.extract_strided_slice %2 {offsets = [0, 16], sizes = [32, 240], strides = [1, 1]} : vector<32x256xbf16> to vector<32x240xbf16>
    %67 = tpu.concatenate %66, %65 in 1 : vector<32x240xbf16>, vector<32x16xbf16> -> vector<32x256xbf16>
    %c7 = arith.constant 7 : index
    %c0_38 = arith.constant 0 : index
    %c0_39 = arith.constant 0 : index
    %68 = vector.load %arg2[%c7, %c0_38, %c0_39] : memref<9x64x32xbf16, #tpu.memory_space<vmem>>, vector<1x64x32xbf16>
    %69 = vector.shape_cast %68 : vector<1x64x32xbf16> to vector<64x32xbf16>
    %cst_40 = arith.constant dense<0.000000e+00> : vector<64x256xf32>
    %70 = tpu.matmul %69, %67, %cst_40 {dimension_numbers = #tpu.dot_dimension_numbers<[1], [0], [0], [1], [0, 0, 1, 1], [], []>} : vector<64x32xbf16>, vector<32x256xbf16>, vector<64x256xf32> -> vector<64x256xf32>
    %71 = arith.addf %64, %70 : vector<64x256xf32>
    %cst_41 = arith.constant 0.000000e+00 : bf16
    %72 = vector.broadcast %cst_41 : bf16 to vector<32x17xbf16>
    %73 = vector.extract_strided_slice %2 {offsets = [0, 17], sizes = [32, 239], strides = [1, 1]} : vector<32x256xbf16> to vector<32x239xbf16>
    %74 = tpu.concatenate %73, %72 in 1 : vector<32x239xbf16>, vector<32x17xbf16> -> vector<32x256xbf16>
    %75 = arith.mulf %74, %8 : vector<32x256xbf16>
    %c8 = arith.constant 8 : index
    %c0_42 = arith.constant 0 : index
    %c0_43 = arith.constant 0 : index
    %76 = vector.load %arg2[%c8, %c0_42, %c0_43] : memref<9x64x32xbf16, #tpu.memory_space<vmem>>, vector<1x64x32xbf16>
    %77 = vector.shape_cast %76 : vector<1x64x32xbf16> to vector<64x32xbf16>
    %cst_44 = arith.constant dense<0.000000e+00> : vector<64x256xf32>
    %78 = tpu.matmul %77, %75, %cst_44 {dimension_numbers = #tpu.dot_dimension_numbers<[1], [0], [0], [1], [0, 0, 1, 1], [], []>} : vector<64x32xbf16>, vector<32x256xbf16>, vector<64x256xf32> -> vector<64x256xf32>
    %79 = arith.addf %71, %78 : vector<64x256xf32>
    %c0_45 = arith.constant 0 : index
    %c0_46 = arith.constant 0 : index
    %80 = vector.load %arg3[%c0_45, %c0_46] : memref<64x1xf32, #tpu.memory_space<vmem>>, vector<64x1xf32>
    %81 = vector.broadcast %80 : vector<64x1xf32> to vector<64x256xf32>
    %82 = arith.addf %79, %81 : vector<64x256xf32>
    %cst_47 = arith.constant 0.000000e+00 : f32
    %83 = vector.broadcast %cst_47 : f32 to vector<64x256xf32>
    %84 = arith.maximumf %82, %83 : vector<64x256xf32>
    %85 = arith.truncf %84 : vector<64x256xf32> to vector<64x256xbf16>
    %cst_48 = arith.constant 0.000000e+00 : bf16
    %86 = vector.broadcast %cst_48 : bf16 to vector<64x17xbf16>
    %87 = vector.extract_strided_slice %85 {offsets = [0, 0], sizes = [64, 239], strides = [1, 1]} : vector<64x256xbf16> to vector<64x239xbf16>
    %88 = tpu.concatenate %86, %87 in 1 : vector<64x17xbf16>, vector<64x239xbf16> -> vector<64x256xbf16>
    %89 = arith.mulf %88, %11 : vector<64x256xbf16>
    %c0_49 = arith.constant 0 : index
    %c0_50 = arith.constant 0 : index
    %c0_51 = arith.constant 0 : index
    %90 = vector.load %arg4[%c0_49, %c0_50, %c0_51] : memref<9x8x64xbf16, #tpu.memory_space<vmem>>, vector<1x8x64xbf16>
    %91 = vector.shape_cast %90 : vector<1x8x64xbf16> to vector<8x64xbf16>
    %cst_52 = arith.constant dense<0.000000e+00> : vector<8x256xf32>
    %92 = tpu.matmul %91, %89, %cst_52 {dimension_numbers = #tpu.dot_dimension_numbers<[1], [0], [0], [1], [0, 0, 1, 1], [], []>} : vector<8x64xbf16>, vector<64x256xbf16>, vector<8x256xf32> -> vector<8x256xf32>
    %cst_53 = arith.constant 0.000000e+00 : bf16
    %93 = vector.broadcast %cst_53 : bf16 to vector<64x16xbf16>
    %94 = vector.extract_strided_slice %85 {offsets = [0, 0], sizes = [64, 240], strides = [1, 1]} : vector<64x256xbf16> to vector<64x240xbf16>
    %95 = tpu.concatenate %93, %94 in 1 : vector<64x16xbf16>, vector<64x240xbf16> -> vector<64x256xbf16>
    %c1_54 = arith.constant 1 : index
    %c0_55 = arith.constant 0 : index
    %c0_56 = arith.constant 0 : index
    %96 = vector.load %arg4[%c1_54, %c0_55, %c0_56] : memref<9x8x64xbf16, #tpu.memory_space<vmem>>, vector<1x8x64xbf16>
    %97 = vector.shape_cast %96 : vector<1x8x64xbf16> to vector<8x64xbf16>
    %cst_57 = arith.constant dense<0.000000e+00> : vector<8x256xf32>
    %98 = tpu.matmul %97, %95, %cst_57 {dimension_numbers = #tpu.dot_dimension_numbers<[1], [0], [0], [1], [0, 0, 1, 1], [], []>} : vector<8x64xbf16>, vector<64x256xbf16>, vector<8x256xf32> -> vector<8x256xf32>
    %99 = arith.addf %92, %98 : vector<8x256xf32>
    %cst_58 = arith.constant 0.000000e+00 : bf16
    %100 = vector.broadcast %cst_58 : bf16 to vector<64x15xbf16>
    %101 = vector.extract_strided_slice %85 {offsets = [0, 0], sizes = [64, 241], strides = [1, 1]} : vector<64x256xbf16> to vector<64x241xbf16>
    %102 = tpu.concatenate %100, %101 in 1 : vector<64x15xbf16>, vector<64x241xbf16> -> vector<64x256xbf16>
    %103 = arith.mulf %102, %14 : vector<64x256xbf16>
    %c2_59 = arith.constant 2 : index
    %c0_60 = arith.constant 0 : index
    %c0_61 = arith.constant 0 : index
    %104 = vector.load %arg4[%c2_59, %c0_60, %c0_61] : memref<9x8x64xbf16, #tpu.memory_space<vmem>>, vector<1x8x64xbf16>
    %105 = vector.shape_cast %104 : vector<1x8x64xbf16> to vector<8x64xbf16>
    %cst_62 = arith.constant dense<0.000000e+00> : vector<8x256xf32>
    %106 = tpu.matmul %105, %103, %cst_62 {dimension_numbers = #tpu.dot_dimension_numbers<[1], [0], [0], [1], [0, 0, 1, 1], [], []>} : vector<8x64xbf16>, vector<64x256xbf16>, vector<8x256xf32> -> vector<8x256xf32>
    %107 = arith.addf %99, %106 : vector<8x256xf32>
    %cst_63 = arith.constant 0.000000e+00 : bf16
    %108 = vector.broadcast %cst_63 : bf16 to vector<64x1xbf16>
    %109 = vector.extract_strided_slice %85 {offsets = [0, 0], sizes = [64, 255], strides = [1, 1]} : vector<64x256xbf16> to vector<64x255xbf16>
    %110 = tpu.concatenate %108, %109 in 1 : vector<64x1xbf16>, vector<64x255xbf16> -> vector<64x256xbf16>
    %111 = arith.mulf %110, %11 : vector<64x256xbf16>
    %c3_64 = arith.constant 3 : index
    %c0_65 = arith.constant 0 : index
    %c0_66 = arith.constant 0 : index
    %112 = vector.load %arg4[%c3_64, %c0_65, %c0_66] : memref<9x8x64xbf16, #tpu.memory_space<vmem>>, vector<1x8x64xbf16>
    %113 = vector.shape_cast %112 : vector<1x8x64xbf16> to vector<8x64xbf16>
    %cst_67 = arith.constant dense<0.000000e+00> : vector<8x256xf32>
    %114 = tpu.matmul %113, %111, %cst_67 {dimension_numbers = #tpu.dot_dimension_numbers<[1], [0], [0], [1], [0, 0, 1, 1], [], []>} : vector<8x64xbf16>, vector<64x256xbf16>, vector<8x256xf32> -> vector<8x256xf32>
    %115 = arith.addf %107, %114 : vector<8x256xf32>
    %c4_68 = arith.constant 4 : index
    %c0_69 = arith.constant 0 : index
    %c0_70 = arith.constant 0 : index
    %116 = vector.load %arg4[%c4_68, %c0_69, %c0_70] : memref<9x8x64xbf16, #tpu.memory_space<vmem>>, vector<1x8x64xbf16>
    %117 = vector.shape_cast %116 : vector<1x8x64xbf16> to vector<8x64xbf16>
    %cst_71 = arith.constant dense<0.000000e+00> : vector<8x256xf32>
    %118 = tpu.matmul %117, %85, %cst_71 {dimension_numbers = #tpu.dot_dimension_numbers<[1], [0], [0], [1], [0, 0, 1, 1], [], []>} : vector<8x64xbf16>, vector<64x256xbf16>, vector<8x256xf32> -> vector<8x256xf32>
    %119 = arith.addf %115, %118 : vector<8x256xf32>
    %cst_72 = arith.constant 0.000000e+00 : bf16
    %120 = vector.broadcast %cst_72 : bf16 to vector<64x1xbf16>
    %121 = vector.extract_strided_slice %85 {offsets = [0, 1], sizes = [64, 255], strides = [1, 1]} : vector<64x256xbf16> to vector<64x255xbf16>
    %122 = tpu.concatenate %121, %120 in 1 : vector<64x255xbf16>, vector<64x1xbf16> -> vector<64x256xbf16>
    %123 = arith.mulf %122, %14 : vector<64x256xbf16>
    %c5_73 = arith.constant 5 : index
    %c0_74 = arith.constant 0 : index
    %c0_75 = arith.constant 0 : index
    %124 = vector.load %arg4[%c5_73, %c0_74, %c0_75] : memref<9x8x64xbf16, #tpu.memory_space<vmem>>, vector<1x8x64xbf16>
    %125 = vector.shape_cast %124 : vector<1x8x64xbf16> to vector<8x64xbf16>
    %cst_76 = arith.constant dense<0.000000e+00> : vector<8x256xf32>
    %126 = tpu.matmul %125, %123, %cst_76 {dimension_numbers = #tpu.dot_dimension_numbers<[1], [0], [0], [1], [0, 0, 1, 1], [], []>} : vector<8x64xbf16>, vector<64x256xbf16>, vector<8x256xf32> -> vector<8x256xf32>
    %127 = arith.addf %119, %126 : vector<8x256xf32>
    %cst_77 = arith.constant 0.000000e+00 : bf16
    %128 = vector.broadcast %cst_77 : bf16 to vector<64x15xbf16>
    %129 = vector.extract_strided_slice %85 {offsets = [0, 15], sizes = [64, 241], strides = [1, 1]} : vector<64x256xbf16> to vector<64x241xbf16>
    %130 = tpu.concatenate %129, %128 in 1 : vector<64x241xbf16>, vector<64x15xbf16> -> vector<64x256xbf16>
    %131 = arith.mulf %130, %11 : vector<64x256xbf16>
    %c6_78 = arith.constant 6 : index
    %c0_79 = arith.constant 0 : index
    %c0_80 = arith.constant 0 : index
    %132 = vector.load %arg4[%c6_78, %c0_79, %c0_80] : memref<9x8x64xbf16, #tpu.memory_space<vmem>>, vector<1x8x64xbf16>
    %133 = vector.shape_cast %132 : vector<1x8x64xbf16> to vector<8x64xbf16>
    %cst_81 = arith.constant dense<0.000000e+00> : vector<8x256xf32>
    %134 = tpu.matmul %133, %131, %cst_81 {dimension_numbers = #tpu.dot_dimension_numbers<[1], [0], [0], [1], [0, 0, 1, 1], [], []>} : vector<8x64xbf16>, vector<64x256xbf16>, vector<8x256xf32> -> vector<8x256xf32>
    %135 = arith.addf %127, %134 : vector<8x256xf32>
    %cst_82 = arith.constant 0.000000e+00 : bf16
    %136 = vector.broadcast %cst_82 : bf16 to vector<64x16xbf16>
    %137 = vector.extract_strided_slice %85 {offsets = [0, 16], sizes = [64, 240], strides = [1, 1]} : vector<64x256xbf16> to vector<64x240xbf16>
    %138 = tpu.concatenate %137, %136 in 1 : vector<64x240xbf16>, vector<64x16xbf16> -> vector<64x256xbf16>
    %c7_83 = arith.constant 7 : index
    %c0_84 = arith.constant 0 : index
    %c0_85 = arith.constant 0 : index
    %139 = vector.load %arg4[%c7_83, %c0_84, %c0_85] : memref<9x8x64xbf16, #tpu.memory_space<vmem>>, vector<1x8x64xbf16>
    %140 = vector.shape_cast %139 : vector<1x8x64xbf16> to vector<8x64xbf16>
    %cst_86 = arith.constant dense<0.000000e+00> : vector<8x256xf32>
    %141 = tpu.matmul %140, %138, %cst_86 {dimension_numbers = #tpu.dot_dimension_numbers<[1], [0], [0], [1], [0, 0, 1, 1], [], []>} : vector<8x64xbf16>, vector<64x256xbf16>, vector<8x256xf32> -> vector<8x256xf32>
    %142 = arith.addf %135, %141 : vector<8x256xf32>
    %cst_87 = arith.constant 0.000000e+00 : bf16
    %143 = vector.broadcast %cst_87 : bf16 to vector<64x17xbf16>
    %144 = vector.extract_strided_slice %85 {offsets = [0, 17], sizes = [64, 239], strides = [1, 1]} : vector<64x256xbf16> to vector<64x239xbf16>
    %145 = tpu.concatenate %144, %143 in 1 : vector<64x239xbf16>, vector<64x17xbf16> -> vector<64x256xbf16>
    %146 = arith.mulf %145, %14 : vector<64x256xbf16>
    %c8_88 = arith.constant 8 : index
    %c0_89 = arith.constant 0 : index
    %c0_90 = arith.constant 0 : index
    %147 = vector.load %arg4[%c8_88, %c0_89, %c0_90] : memref<9x8x64xbf16, #tpu.memory_space<vmem>>, vector<1x8x64xbf16>
    %148 = vector.shape_cast %147 : vector<1x8x64xbf16> to vector<8x64xbf16>
    %cst_91 = arith.constant dense<0.000000e+00> : vector<8x256xf32>
    %149 = tpu.matmul %148, %146, %cst_91 {dimension_numbers = #tpu.dot_dimension_numbers<[1], [0], [0], [1], [0, 0, 1, 1], [], []>} : vector<8x64xbf16>, vector<64x256xbf16>, vector<8x256xf32> -> vector<8x256xf32>
    %150 = arith.addf %142, %149 : vector<8x256xf32>
    %c0_92 = arith.constant 0 : index
    %c0_93 = arith.constant 0 : index
    %151 = vector.load %arg5[%c0_92, %c0_93] : memref<8x1xf32, #tpu.memory_space<vmem>>, vector<8x1xf32>
    %152 = vector.broadcast %151 : vector<8x1xf32> to vector<8x256xf32>
    %153 = arith.addf %150, %152 : vector<8x256xf32>
    %c0_94 = arith.constant 0 : index
    %c0_95 = arith.constant 0 : index
    %c0_96 = arith.constant 0 : index
    %154 = vector.load %arg8[%c0_94, %c0_95, %c0_96] : memref<1x8x256xf32, #tpu.memory_space<vmem>>, vector<1x8x256xf32>
    %155 = vector.shape_cast %154 : vector<1x8x256xf32> to vector<8x256xf32>
    %156 = vector.shape_cast %153 : vector<8x256xf32> to vector<1x8x256xf32>
    tpu.vector_store %arg8[%c0_94, %c0_95, %c0_96], %156 {strides = array<i32>} : memref<1x8x256xf32, #tpu.memory_space<vmem>>, vector<1x8x256xf32>,
    return
  }
  func.func @transform_0(%arg0: i32) -> (i32, i32, i32) {
    %c0_i32 = arith.constant 0 : i32
    %c0_i32_0 = arith.constant 0 : i32
    %c0_i32_1 = arith.constant 0 : i32
    return %arg0, %c0_i32, %c0_i32_0 : i32, i32, i32
  }
  func.func @transform_1(%arg0: i32) -> (i32, i32, i32) {
    %c0_i32 = arith.constant 0 : i32
    %c0_i32_0 = arith.constant 0 : i32
    %c0_i32_1 = arith.constant 0 : i32
    %c0_i32_2 = arith.constant 0 : i32
    return %c0_i32, %c0_i32_0, %c0_i32_1 : i32, i32, i32
  }
  func.func @transform_2(%arg0: i32) -> (i32, i32) {
    %c0_i32 = arith.constant 0 : i32
    %c0_i32_0 = arith.constant 0 : i32
    %c0_i32_1 = arith.constant 0 : i32
    return %c0_i32, %c0_i32_0 : i32, i32
  }
  func.func @transform_3(%arg0: i32) -> (i32, i32, i32) {
    %c0_i32 = arith.constant 0 : i32
    %c0_i32_0 = arith.constant 0 : i32
    %c0_i32_1 = arith.constant 0 : i32
    %c0_i32_2 = arith.constant 0 : i32
    return %c0_i32, %c0_i32_0, %c0_i32_1 : i32, i32, i32
  }
  func.func @transform_4(%arg0: i32) -> (i32, i32) {
    %c0_i32 = arith.constant 0 : i32
    %c0_i32_0 = arith.constant 0 : i32
    %c0_i32_1 = arith.constant 0 : i32
    return %c0_i32, %c0_i32_0 : i32, i32
  }
  func.func @transform_5(%arg0: i32) -> (i32, i32) {
    %c0_i32 = arith.constant 0 : i32
    %c0_i32_0 = arith.constant 0 : i32
    %c0_i32_1 = arith.constant 0 : i32
    return %c0_i32, %c0_i32_0 : i32, i32
  }
  func.func @transform_6(%arg0: i32) -> (i32, i32) {
    %c0_i32 = arith.constant 0 : i32
    %c0_i32_0 = arith.constant 0 : i32
    %c0_i32_1 = arith.constant 0 : i32
    return %c0_i32, %c0_i32_0 : i32, i32
  }
  func.func @transform_7(%arg0: i32) -> (i32, i32, i32) {
    %c0_i32 = arith.constant 0 : i32
    %c0_i32_0 = arith.constant 0 : i32
    %c0_i32_1 = arith.constant 0 : i32
    return %arg0, %c0_i32, %c0_i32_0 : i32, i32, i32
  }
}

</mosaic_0001>

<llo_original>
// kernel: flow_head_pallas.1
$region0: #{flow_head_pallas.1}
  #allocation0 [shape = 'u32[]', space=smem, size = 0x4, offset = 0x4, fixed_abs, tag = 'smem constant byte address 0x4 - core index']
  #allocation1 [shape = 'u32[144,128]{1,0:T(1,128)}', space=vmem, size = 0x12000, scoped, tag = 'internal scratch']
  %s0 = inlined_call_operand.vmem [shape: f32[2,32,256], index: 0, kind: input, shape index: {}]
  %s1 = inlined_call_operand.vmem [shape: bf16[9,64,32], index: 1, kind: input, shape index: {}]
  %s2 = inlined_call_operand.vmem [shape: f32[64,1], index: 2, kind: input, shape index: {}]
  %s3 = inlined_call_operand.vmem [shape: bf16[9,8,64], index: 3, kind: input, shape index: {}]
  %s4 = inlined_call_operand.vmem [shape: f32[8,1], index: 4, kind: input, shape index: {}]
  %s5 = inlined_call_operand.vmem [shape: bf16[1,256], index: 5, kind: input, shape index: {}]
  %s6 = inlined_call_operand.vmem [shape: bf16[1,256], index: 6, kind: input, shape index: {}]
  %s7 = inlined_call_operand.vmem [shape: f32[2,8,256], index: 7, kind: output, shape index: {}]
  %s8 = sld [smem:[#allocation0]]
  $region61: #{flow_head_pallas.1} parent=0
    _
  %s10 = ssub.s32 1, %s8
  %s11 = scalar_select 0, %s10, %s8
  loop: start=0, step=1, limit=4
  $region2: #{flow_head_pallas.1} parent=0 // loop_pre_header
    _
  $region3: #{flow_head_pallas.1} parent=0 // loop_header
    %s13 = sphi 0, %s17
    %p14 = scmp.ge.s32.totalorder %s13, 4
    %s23 = sphi 0, %s25
    %s26 = sphi 0, %s23
    %s27 = sphi 0, %s26
    %s43 = sphi 0, %s27
    %s47 = sphi 0, %s47
    %s49 = sphi 0, %s47
    %s50 = sphi 0, %s49
    %s64 = sphi 0, %s50
    %s68 = sphi 0, %s68
    %s70 = sphi 0, %s68
    %s71 = sphi 0, %s70
    %s85 = sphi 0, %s71
    %s89 = sphi 0, %s89
    %s91 = sphi 0, %s89
    %s92 = sphi 0, %s91
    %s106 = sphi 0, %s92
    %s110 = sphi 0, %s110
    %s112 = sphi 0, %s110
    %s113 = sphi 0, %s112
    %s127 = sphi 0, %s113
    %s131 = sphi 0, %s131
    %s133 = sphi 0, %s131
    %s134 = sphi 0, %s133
    %s148 = sphi 0, %s134
    %s152 = sphi 0, %s152
    %s154 = sphi 0, %s152
    %s155 = sphi 0, %s154
    %s169 = sphi 0, %s155
    %s175 = sphi 0, %s177
    %s178 = sphi 0, %s175
    %s179 = sphi 0, %s178
    %s195 = sphi 0, %s179
  $region4: #{flow_head_pallas.1} parent=0 // loop_header_branch
    %16 = sbr.rel (%p14) target = $region8
  $region5: #{flow_head_pallas.1} parent=0 // loop_body
    %s18 = ssub.s32 %s13, 1
    %s19 = ssub.s32 %s13, 2
    %s20 = sadd.s32 %s13, 1
    %s21 = ssub.s32 %s13, %s20
    %p22 = scmp.eq.s32.totalorder %s21, 0
    %s24 = sadd.s32 %s23, 1
    %s25 = scalar_select %p22, %s23, %s24
    %p28 = pneg %p22
    %p29 = scmp.eq.s32.totalorder %s13, 1
    %p30 = por %p28, %p29
    %p31 = scmp.ne.s32.totalorder %s23, %s26
    %p32 = scmp.eq.s32.totalorder %s13, 0
    %p33 = por %p31, %p32
    %p34 = scmp.ne.s32.totalorder %s23, %s26
    %p35 = scmp.eq.s32.totalorder %s18, 1
    %p36 = por %p34, %p35
    %p37 = scmp.ne.s32.totalorder %s26, %s27
    %p38 = scmp.eq.s32.totalorder %s18, 0
    %p39 = por %p37, %p38
    %p40 = scmp.ne.s32.totalorder %s26, %s27
    %p41 = scmp.eq.s32.totalorder %s19, 1
    %p42 = por %p40, %p41
    %p44 = scmp.ne.s32.totalorder %s27, %s43
    %p45 = scmp.eq.s32.totalorder %s19, 0
    %p46 = por %p44, %p45
    %s48 = sadd.s32 %s47, 1
    %p51 = scmp.eq.s32.totalorder %s13, 1
    %p52 = scmp.ne.s32.totalorder %s47, %s49
    %p53 = scmp.eq.s32.totalorder %s13, 0
    %p54 = por %p52, %p53
    %p55 = scmp.ne.s32.totalorder %s47, %s49
    %p56 = scmp.eq.s32.totalorder %s18, 1
    %p57 = por %p55, %p56
    %p58 = scmp.ne.s32.totalorder %s49, %s50
    %p59 = scmp.eq.s32.totalorder %s18, 0
    %p60 = por %p58, %p59
    %p61 = scmp.ne.s32.totalorder %s49, %s50
    %p62 = scmp.eq.s32.totalorder %s19, 1
    %p63 = por %p61, %p62
    %p65 = scmp.ne.s32.totalorder %s50, %s64
    %p66 = scmp.eq.s32.totalorder %s19, 0
    %p67 = por %p65, %p66
    %s69 = sadd.s32 %s68, 1
    %p72 = scmp.eq.s32.totalorder %s13, 1
    %p73 = scmp.ne.s32.totalorder %s68, %s70
    %p74 = scmp.eq.s32.totalorder %s13, 0
    %p75 = por %p73, %p74
    %p76 = scmp.ne.s32.totalorder %s68, %s70
    %p77 = scmp.eq.s32.totalorder %s18, 1
    %p78 = por %p76, %p77
    %p79 = scmp.ne.s32.totalorder %s70, %s71
    %p80 = scmp.eq.s32.totalorder %s18, 0
    %p81 = por %p79, %p80
    %p82 = scmp.ne.s32.totalorder %s70, %s71
    %p83 = scmp.eq.s32.totalorder %s19, 1
    %p84 = por %p82, %p83
    %p86 = scmp.ne.s32.totalorder %s71, %s85
    %p87 = scmp.eq.s32.totalorder %s19, 0
    %p88 = por %p86, %p87
    %s90 = sadd.s32 %s89, 1
    %p93 = scmp.eq.s32.totalorder %s13, 1
    %p94 = scmp.ne.s32.totalorder %s89, %s91
    %p95 = scmp.eq.s32.totalorder %s13, 0
    %p96 = por %p94, %p95
    %p97 = scmp.ne.s32.totalorder %s89, %s91
    %p98 = scmp.eq.s32.totalorder %s18, 1
    %p99 = por %p97, %p98
    %p100 = scmp.ne.s32.totalorder %s91, %s92
    %p101 = scmp.eq.s32.totalorder %s18, 0
    %p102 = por %p100, %p101
    %p103 = scmp.ne.s32.totalorder %s91, %s92
    %p104 = scmp.eq.s32.totalorder %s19, 1
    %p105 = por %p103, %p104
    %p107 = scmp.ne.s32.totalorder %s92, %s106
    %p108 = scmp.eq.s32.totalorder %s19, 0
    %p109 = por %p107, %p108
    %s111 = sadd.s32 %s110, 1
    %p114 = scmp.eq.s32.totalorder %s13, 1
    %p115 = scmp.ne.s32.totalorder %s110, %s112
    %p116 = scmp.eq.s32.totalorder %s13, 0
    %p117 = por %p115, %p116
    %p118 = scmp.ne.s32.totalorder %s110, %s112
    %p119 = scmp.eq.s32.totalorder %s18, 1
    %p120 = por %p118, %p119
    %p121 = scmp.ne.s32.totalorder %s112, %s113
    %p122 = scmp.eq.s32.totalorder %s18, 0
    %p123 = por %p121, %p122
    %p124 = scmp.ne.s32.totalorder %s112, %s113
    %p125 = scmp.eq.s32.totalorder %s19, 1
    %p126 = por %p124, %p125
    %p128 = scmp.ne.s32.totalorder %s113, %s127
    %p129 = scmp.eq.s32.totalorder %s19, 0
    %p130 = por %p128, %p129
    %s132 = sadd.s32 %s131, 1
    %p135 = scmp.eq.s32.totalorder %s13, 1
    %p136 = scmp.ne.s32.totalorder %s131, %s133
    %p137 = scmp.eq.s32.totalorder %s13, 0
    %p138 = por %p136, %p137
    %p139 = scmp.ne.s32.totalorder %s131, %s133
    %p140 = scmp.eq.s32.totalorder %s18, 1
    %p141 = por %p139, %p140
    %p142 = scmp.ne.s32.totalorder %s133, %s134
    %p143 = scmp.eq.s32.totalorder %s18, 0
    %p144 = por %p142, %p143
    %p145 = scmp.ne.s32.totalorder %s133, %s134
    %p146 = scmp.eq.s32.totalorder %s19, 1
    %p147 = por %p145, %p146
    %p149 = scmp.ne.s32.totalorder %s134, %s148
    %p150 = scmp.eq.s32.totalorder %s19, 0
    %p151 = por %p149, %p150
    %s153 = sadd.s32 %s152, 1
    %p156 = scmp.eq.s32.totalorder %s13, 1
    %p157 = scmp.ne.s32.totalorder %s152, %s154
    %p158 = scmp.eq.s32.totalorder %s13, 0
    %p159 = por %p157, %p158
    %p160 = scmp.ne.s32.totalorder %s152, %s154
    %p161 = scmp.eq.s32.totalorder %s18, 1
    %p162 = por %p160, %p161
    %p163 = scmp.ne.s32.totalorder %s154, %s155
    %p164 = scmp.eq.s32.totalorder %s18, 0
    %p165 = por %p163, %p164
    %p166 = scmp.ne.s32.totalorder %s154, %s155
    %p167 = scmp.eq.s32.totalorder %s19, 1
    %p168 = por %p166, %p167
    %p170 = scmp.ne.s32.totalorder %s155, %s169
    %p171 = scmp.eq.s32.totalorder %s19, 0
    %p172 = por %p170, %p171
    %s173 = ssub.s32 %s13, %s20
    %p174 = scmp.eq.s32.totalorder %s173, 0
    %s176 = sadd.s32 %s175, 1
    %s177 = scalar_select %p174, %s175, %s176
    %p180 = pneg %p174
    %p181 = scmp.eq.s32.totalorder %s13, 1
    %p182 = por %p180, %p181
    %p183 = scmp.ne.s32.totalorder %s175, %s178
    %p184 = scmp.eq.s32.totalorder %s13, 0
    %p185 = por %p183, %p184
    %p186 = scmp.ne.s32.totalorder %s175, %s178
    %p187 = scmp.eq.s32.totalorder %s18, 1
    %p188 = por %p186, %p187
    %p189 = scmp.ne.s32.totalorder %s178, %s179
    %p190 = scmp.eq.s32.totalorder %s18, 0
    %p191 = por %p189, %p190
    %p192 = scmp.ne.s32.totalorder %s178, %s179
    %p193 = scmp.eq.s32.totalorder %s19, 1
    %p194 = por %p192, %p193
    %p196 = scmp.ne.s32.totalorder %s179, %s195
    %p197 = scmp.eq.s32.totalorder %s19, 0
    %p198 = por %p196, %p197
    %p199 = scmp.le.s32.totalorder 1, %s13
    %p200 = scmp.lt.s32.totalorder %s13, 3
    %p201 = pnand %p199, %p200
    %p202 = pneg %p201
    // Predicated region
    $region9: #{flow_head_pallas.1} parent=5 // pred_check
      _
    $region10: #{flow_head_pallas.1} parent=5 // pred_check_branch
      %204 = sbr.rel (%p201) target = $region12
    $region11: #{flow_head_pallas.1} parent=5 // pred_region
      %s205 = ssub.s32 %s13, 1
      // Predicated region
      $region13: #{flow_head_pallas.1} parent=11 // pred_check
        %p206 = pneg %p60
      $region14: #{flow_head_pallas.1} parent=11 // pred_check_branch
        %208 = sbr.rel (%p206) target = $region16
      $region15: #{flow_head_pallas.1} parent=11 // pred_region
        _
      $region16: #{flow_head_pallas.1} parent=11 // pred_fallthru
        _
      // Predicated region
      $region17: #{flow_head_pallas.1} parent=11 // pred_check
        %p209 = pneg %p81
      $region18: #{flow_head_pallas.1} parent=11 // pred_check_branch
        %211 = sbr.rel (%p209) target = $region20
      $region19: #{flow_head_pallas.1} parent=11 // pred_region
        _
      $region20: #{flow_head_pallas.1} parent=11 // pred_fallthru
        _
      // Predicated region
      $region21: #{flow_head_pallas.1} parent=11 // pred_check
        %p212 = pneg %p102
      $region22: #{flow_head_pallas.1} parent=11 // pred_check_branch
        %214 = sbr.rel (%p212) target = $region24
      $region23: #{flow_head_pallas.1} parent=11 // pred_region
        _
      $region24: #{flow_head_pallas.1} parent=11 // pred_fallthru
        _
      // Predicated region
      $region25: #{flow_head_pallas.1} parent=11 // pred_check
        %p215 = pneg %p123
      $region26: #{flow_head_pallas.1} parent=11 // pred_check_branch
        %217 = sbr.rel (%p215) target = $region28
      $region27: #{flow_head_pallas.1} parent=11 // pred_region
        _
      $region28: #{flow_head_pallas.1} parent=11 // pred_fallthru
        _
      // Predicated region
      $region29: #{flow_head_pallas.1} parent=11 // pred_check
        %p218 = pneg %p144
      $region30: #{flow_head_pallas.1} parent=11 // pred_check_branch
        %220 = sbr.rel (%p218) target = $region32
      $region31: #{flow_head_pallas.1} parent=11 // pred_region
        _
      $region32: #{flow_head_pallas.1} parent=11 // pred_fallthru
        _
      // Predicated region
      $region33: #{flow_head_pallas.1} parent=11 // pred_check
        %p221 = pneg %p165
      $region34: #{flow_head_pallas.1} parent=11 // pred_check_branch
        %223 = sbr.rel (%p221) target = $region36
      $region35: #{flow_head_pallas.1} parent=11 // pred_region
        _
      $region36: #{flow_head_pallas.1} parent=11 // pred_fallthru
        _
    $region12: #{flow_head_pallas.1} parent=5 // pred_fallthru
      _
    %p224 = scmp.lt.s32.totalorder %s13, 2
    // Predicated region
    $region37: #{flow_head_pallas.1} parent=5 // pred_check
      %p225 = pneg %p224
    $region38: #{flow_head_pallas.1} parent=5 // pred_check_branch
      %227 = sbr.rel (%p225) target = $region40
    $region39: #{flow_head_pallas.1} parent=5 // pred_region
      // Predicated region
      $region41: #{flow_head_pallas.1} parent=39 // pred_check
        %p228 = pneg %p33
      $region42: #{flow_head_pallas.1} parent=39 // pred_check_branch
        %230 = sbr.rel (%p228) target = $region44
      $region43: #{flow_head_pallas.1} parent=39 // pred_region
        %p231 = scmp.lt.s32.totalorder %s13, 1
        %s232 = scalar_select %p231, %s13, 1
        %s233 = smul.addr %s232, 8
        %s234 = smul.addr %s233, 8
        %s235 = scalar_lea.vmem %s0, %s234
      $region44: #{flow_head_pallas.1} parent=39 // pred_fallthru
        _
    $region40: #{flow_head_pallas.1} parent=5 // pred_fallthru
      _
    %p236 = scmp.le.s32.totalorder 1, %s13
    %p237 = scmp.lt.s32.totalorder %s13, 3
    %p238 = pnand %p236, %p237
    %p239 = pneg %p238
    // Predicated region
    $region45: #{flow_head_pallas.1} parent=5 // pred_check
      _
    $region46: #{flow_head_pallas.1} parent=5 // pred_check_branch
      %241 = sbr.rel (%p238) target = $region48
    $region47: #{flow_head_pallas.1} parent=5 // pred_region
      %s242 = ssub.s32 %s13, 1
      %p243 = scmp.lt.s32.totalorder %s18, 1
      %s244 = scalar_select %p243, %s18, 1
      %s245 = smul.addr %s244, 8
      %s246 = smul.addr %s245, 8
      %s247 = scalar_lea.vmem %s0, %s246
      %p248 = pneg %p39
      %p249 = pneg %p36
      %p250 = pneg %p60
      %p251 = pneg %p57
      %p252 = pneg %p81
      %p253 = pneg %p78
      %p254 = pneg %p102
      %p255 = pneg %p99
      %p256 = pneg %p123
      %p257 = pneg %p120
      %p258 = pneg %p144
      %p259 = pneg %p141
      %p260 = pneg %p165
      %p261 = pneg %p162
      %p262 = pneg %p191
      %p263 = pneg %p188
      %p264 = scmp.lt.s32.totalorder %s18, 1
      %s265 = scalar_select %p264, %s18, 1
      %s266 = smul.addr %s265, 2
      %s267 = smul.addr %s266, 8
      %s268 = scalar_lea.vmem %s7, %s267
      %p269 = scmp.lt.s32.totalorder %s18, 1
      %s270 = scalar_select %p269, %s18, 1
      %s271 = smul.addr %s270, 8
      %s272 = smul.addr %s271, 8
      %s273 = scalar_lea.vmem %s0, %s272
      %p274 = scmp.lt.s32.totalorder %s18, 1
      %s275 = scalar_select %p274, %s18, 1
      %s276 = smul.addr %s275, 2
      %s277 = smul.addr %s276, 8
      %s278 = scalar_lea.vmem %s7, %s277
      %v280 = vld [vmem:[%s273] sm:$0xff]
      %v281 = vld [vmem:[%s273 + $0x8] sm:$0xff]
      %v282 = vld [vmem:[%s273 + $0x10] sm:$0xff]
      %v283 = vld [vmem:[%s273 + $0x18] sm:$0xff]
      %v284 = vld [vmem:[%s273 + $0x20] sm:$0xff]
      %v285 = vld [vmem:[%s273 + $0x28] sm:$0xff]
      %v286 = vld [vmem:[%s273 + $0x30] sm:$0xff]
      %v287 = vld [vmem:[%s273 + $0x38] sm:$0xff]
      %v288 = vpack.c.bf16 %v282, %v280
      %v289 = vpack.c.bf16 %v283, %v281
      %v290 = vpack.c.bf16 %v286, %v284
      %v291 = vpack.c.bf16 %v287, %v285
      %v292 = vld [vmem:[%s5] sm:$0x3]
      %v295 = vunpack.c.l.s4 1966171168
      %v296 = vunpack.c.0.s8 %v295
      %v297 = vlaneseq
      %v298 = vshrl.u32 %v297, 7
      %v299 = vsub.s32 %v296, %v298
      %v300 = vrot.slane %v292, %v299
      %v301 = vcombine.high %v300, %v300
      %v303 = vunpack.c.l.s4 1966171168
      %v304 = vunpack.c.0.s8 %v303
      %v305 = vlaneseq
      %v306 = vshrl.u32 %v305, 7
      %v307 = vsub.s32 %v304, %v306
      %v308 = vrot.slane %v300, %v307
      %v310 = vunpack.c.l.s4 1966171168
      %v311 = vunpack.c.0.s8 %v310
      %v312 = vlaneseq
      %v313 = vshrl.u32 %v312, 7
      %v314 = vsub.s32 %v311, %v313
      %v315 = vrot.slane %v301, %v314
      %v317 = vpack.i.b16 %v308, %v308
      %v319 = vlaneseq
      %v320 = vshrl.u32 %v319, 7
      %v321 = vsub.s32 0, %v320
      %v322 = vrot.slane %v317, %v321
      %v324 = vpack.i.b16 %v315, %v315
      %v326 = vlaneseq
      %v327 = vshrl.u32 %v326, 7
      %v328 = vsub.s32 0, %v327
      %v329 = vrot.slane %v324, %v328
      %v330 = vld [vmem:[%s6] sm:$0x3]
      %v333 = vunpack.c.l.s4 1966171168
      %v334 = vunpack.c.0.s8 %v333
      %v335 = vlaneseq
      %v336 = vshrl.u32 %v335, 7
      %v337 = vsub.s32 %v334, %v336
      %v338 = vrot.slane %v330, %v337
      %v339 = vcombine.high %v338, %v338
      %v341 = vunpack.c.l.s4 1966171168
      %v342 = vunpack.c.0.s8 %v341
      %v343 = vlaneseq
      %v344 = vshrl.u32 %v343, 7
      %v345 = vsub.s32 %v342, %v344
      %v346 = vrot.slane %v338, %v345
      %v348 = vunpack.c.l.s4 1966171168
      %v349 = vunpack.c.0.s8 %v348
      %v350 = vlaneseq
      %v351 = vshrl.u32 %v350, 7
      %v352 = vsub.s32 %v349, %v351
      %v353 = vrot.slane %v339, %v352
      %v355 = vpack.i.b16 %v346, %v346
      %v357 = vlaneseq
      %v358 = vshrl.u32 %v357, 7
      %v359 = vsub.s32 0, %v358
      %v360 = vrot.slane %v355, %v359
      %v362 = vpack.i.b16 %v353, %v353
      %v364 = vlaneseq
      %v365 = vshrl.u32 %v364, 7
      %v366 = vsub.s32 0, %v365
      %v367 = vrot.slane %v362, %v366
      %372 = vrot.lane.b32.xlu0 %v288, 17
      %v373 = vpop.permute.xlu0 %372
      %374 = vrot.lane.b32.xlu0 %v289, 17
      %v375 = vpop.permute.xlu0 %374
      %376 = vrot.lane.b32.xlu0 %v290, 17
      %v377 = vpop.permute.xlu0 %376
      %378 = vrot.lane.b32.xlu0 %v291, 17
      %v379 = vpop.permute.xlu0 %378
      %vm380 = vcmask 138240
      %v381 = vsel %vm380, %v373, %v375
      %v382 = vsel %vm380, %v377, %v379
      %vm385 = vcmask 138240
      %v388 = vsel %vm385, 0, %v373
      %v391 = vsel %vm385, 0, %v377
      %v393 = vmul.bf16 %v388, %v322
      %v394 = vmul.bf16 %v381, %v329
      %v395 = vmul.bf16 %v391, %v322
      %v396 = vmul.bf16 %v382, %v329
      %v397 = vld [vmem:[%s1] sm:$0xf]
      %v398 = vld [vmem:[%s1 + $0x4] sm:$0xf]
      %v399 = vld [vmem:[%s1 + $0x8] sm:$0xf]
      %v400 = vld [vmem:[%s1 + $0xc] sm:$0xf]
      %v401 = vld [vmem:[%s1 + $0x10] sm:$0xf]
      %v402 = vld [vmem:[%s1 + $0x14] sm:$0xf]
      %v403 = vld [vmem:[%s1 + $0x18] sm:$0xf]
      %v404 = vld [vmem:[%s1 + $0x1c] sm:$0xf]
      %405 = vrot.lane.b32.xlu0 %v288, 16
      %v406 = vpop.permute.xlu0 %405
      %407 = vrot.lane.b32.xlu0 %v289, 16
      %v408 = vpop.permute.xlu0 %407
      %409 = vrot.lane.b32.xlu0 %v290, 16
      %v410 = vpop.permute.xlu0 %409
      %411 = vrot.lane.b32.xlu0 %v291, 16
      %v412 = vpop.permute.xlu0 %411
      %vm413 = vcmask 130048
      %v414 = vsel %vm413, %v406, %v408
      %v415 = vsel %vm413, %v410, %v412
      %vm418 = vcmask 130048
      %v420 = vsel %vm418, 0, %v406
      %v423 = vsel %vm418, 0, %v410
      %s425 = scalar_lea.vmem %s1, 32
      %v426 = vld [vmem:[%s425] sm:$0xf]
      %v427 = vld [vmem:[%s425 + $0x4] sm:$0xf]
      %v428 = vld [vmem:[%s425 + $0x8] sm:$0xf]
      %v429 = vld [vmem:[%s425 + $0xc] sm:$0xf]
      %v430 = vld [vmem:[%s425 + $0x10] sm:$0xf]
      %v431 = vld [vmem:[%s425 + $0x14] sm:$0xf]
      %v432 = vld [vmem:[%s425 + $0x18] sm:$0xf]
      %v433 = vld [vmem:[%s425 + $0x1c] sm:$0xf]
      %v442 = vunpack.c.l.b16 %v426
      %v443 = vunpack.c.l.b16 %v427
      %v444 = vunpack.c.l.b16 %v428
      %v445 = vunpack.c.l.b16 %v429
      %v446 = vunpack.c.l.b16 %v430
      %v447 = vunpack.c.l.b16 %v431
      %v448 = vunpack.c.l.b16 %v432
      %v449 = vunpack.c.l.b16 %v433
      %v450 = vpack.c.b16 %v443, %v442
      %v451 = vpack.c.b16 %v445, %v444
      %v452 = vpack.c.b16 %v447, %v446
      %v453 = vpack.c.b16 %v449, %v448
      %vm454 = vcmask 261120
      %v456 = vsel %vm454, %v450, 0
      %v459 = vsel %vm454, %v451, 0
      %v462 = vsel %vm454, %v452, 0
      %v465 = vsel %vm454, %v453, 0
      %467 = vmatprep.subr.bf16.mxu0 0
      %468 = vmatpush1.bf16.msra.mxu0 0
      %469 = vmatprep.subr.bf16.mxu0 0
      %470 = vmatpush1.bf16.msra.mxu0 0
      %471 = vmatprep.subr.bf16.mxu0 0
      %472 = vmatpush1.bf16.msra.mxu0 0
      %473 = vmatprep.subr.bf16.mxu0 0
      %474 = vmatpush1.bf16.msra.mxu0 0
      %475 = vmatprep.subr.bf16.mxu0 0
      %476 = vmatpush1.bf16.msra.mxu0 0
      %477 = vmatprep.subr.bf16.mxu0 0
      %478 = vmatpush1.bf16.msra.mxu0 0
      %479 = vmatprep.subr.bf16.mxu0 %v415
      %480 = vmatpush1.bf16.msra.mxu0 %v423
      %481 = vmatprep.subr.bf16.mxu0 %v414
      %482 = vmatpush1.bf16.msra.mxu0 %v420
      %483 = vmatprep.subr.bf16.mxu0 0
      %484 = vmatpush2.bf16.msra.mxu0 0
      %485 = vmatprep.subr.bf16.mxu0 0
      %486 = vmatpush2.bf16.msra.mxu0 0
      %487 = vmatprep.subr.bf16.mxu0 0
      %488 = vmatpush2.bf16.msra.mxu0 0
      %489 = vmatprep.subr.bf16.mxu0 0
      %490 = vmatpush2.bf16.msra.mxu0 0
      %491 = vmatprep.subr.bf16.mxu0 0
      %492 = vmatpush2.bf16.msra.mxu0 0
      %493 = vmatprep.subr.bf16.mxu0 0
      %494 = vmatpush2.bf16.msra.mxu0 0
      %495 = vmatprep.subr.bf16.mxu0 0
      %496 = vmatpush2.bf16.msra.mxu0 0
      %497 = vmatprep.subr.bf16.mxu0 0
      %498 = vmatpush2.bf16.msra.mxu0 0
      %499 = vmatprep.mubr.bf16.mxu0 0
      %500 = vmatmul.mubr.bf16.gmra.mxu0 %v456
      %v501 = vpop.f32.mrf.mxu0
      %v502 = vadd.f32 0.0, %v501
      %v503 = vpop.f32.mrf.mxu0
      %v504 = vadd.f32 0.0, %v503
      %v505 = vpop.f32.mrf.mxu0
      %v506 = vadd.f32 0.0, %v505
      %v507 = vpop.f32.mrf.mxu0
      %v508 = vadd.f32 0.0, %v507
      %509 = vmatprep.mubr.bf16.mxu0 0
      %510 = vmatmul.mubr.bf16.gmra.mxu0 %v459
      %v511 = vpop.f32.mrf.mxu0
      %v512 = vadd.f32 0.0, %v511
      %v513 = vpop.f32.mrf.mxu0
      %v514 = vadd.f32 0.0, %v513
      %v515 = vpop.f32.mrf.mxu0
      %v516 = vadd.f32 0.0, %v515
      %v517 = vpop.f32.mrf.mxu0
      %v518 = vadd.f32 0.0, %v517
      %519 = vmatprep.mubr.bf16.mxu0 0
      %520 = vmatmul.mubr.bf16.gmra.mxu0 %v462
      %v521 = vpop.f32.mrf.mxu0
      %v522 = vadd.f32 0.0, %v521
      %v523 = vpop.f32.mrf.mxu0
      %v524 = vadd.f32 0.0, %v523
      %v525 = vpop.f32.mrf.mxu0
      %v526 = vadd.f32 0.0, %v525
      %v527 = vpop.f32.mrf.mxu0
      %v528 = vadd.f32 0.0, %v527
      %529 = vmatprep.mubr.bf16.mxu0 0
      %530 = vmatmul.mubr.bf16.gmra.mxu0 %v465
      %v531 = vpop.f32.mrf.mxu0
      %v532 = vadd.f32 0.0, %v531
      %v533 = vpop.f32.mrf.mxu0
      %v534 = vadd.f32 0.0, %v533
      %v535 = vpop.f32.mrf.mxu0
      %v536 = vadd.f32 0.0, %v535
      %v537 = vpop.f32.mrf.mxu0
      %v538 = vadd.f32 0.0, %v537
      %539 = vdwg.mxu0
      %v548 = vunpack.c.l.b16 %v397
      %v549 = vunpack.c.l.b16 %v398
      %v550 = vunpack.c.l.b16 %v399
      %v551 = vunpack.c.l.b16 %v400
      %v552 = vunpack.c.l.b16 %v401
      %v553 = vunpack.c.l.b16 %v402
      %v554 = vunpack.c.l.b16 %v403
      %v555 = vunpack.c.l.b16 %v404
      %v556 = vpack.c.b16 %v549, %v548
      %v557 = vpack.c.b16 %v551, %v550
      %v558 = vpack.c.b16 %v553, %v552
      %v559 = vpack.c.b16 %v555, %v554
      %v561 = vsel %vm454, %v556, 0
      %v564 = vsel %vm454, %v557, 0
      %v567 = vsel %vm454, %v558, 0
      %v570 = vsel %vm454, %v559, 0
      %572 = vmatprep.subr.bf16.mxu0 0
      %573 = vmatpush1.bf16.msra.mxu0 0
      %574 = vmatprep.subr.bf16.mxu0 0
      %575 = vmatpush1.bf16.msra.mxu0 0
      %576 = vmatprep.subr.bf16.mxu0 0
      %577 = vmatpush1.bf16.msra.mxu0 0
      %578 = vmatprep.subr.bf16.mxu0 0
      %579 = vmatpush1.bf16.msra.mxu0 0
      %580 = vmatprep.subr.bf16.mxu0 0
      %581 = vmatpush1.bf16.msra.mxu0 0
      %582 = vmatprep.subr.bf16.mxu0 0
      %583 = vmatpush1.bf16.msra.mxu0 0
      %584 = vmatprep.subr.bf16.mxu0 %v396
      %585 = vmatpush1.bf16.msra.mxu0 %v395
      %586 = vmatprep.subr.bf16.mxu0 %v394
      %587 = vmatpush1.bf16.msra.mxu0 %v393
      %588 = vmatprep.subr.bf16.mxu0 0
      %589 = vmatpush2.bf16.msra.mxu0 0
      %590 = vmatprep.subr.bf16.mxu0 0
      %591 = vmatpush2.bf16.msra.mxu0 0
      %592 = vmatprep.subr.bf16.mxu0 0
      %593 = vmatpush2.bf16.msra.mxu0 0
      %594 = vmatprep.subr.bf16.mxu0 0
      %595 = vmatpush2.bf16.msra.mxu0 0
      %596 = vmatprep.subr.bf16.mxu0 0
      %597 = vmatpush2.bf16.msra.mxu0 0
      %598 = vmatprep.subr.bf16.mxu0 0
      %599 = vmatpush2.bf16.msra.mxu0 0
      %600 = vmatprep.subr.bf16.mxu0 0
      %601 = vmatpush2.bf16.msra.mxu0 0
      %602 = vmatprep.subr.bf16.mxu0 0
      %603 = vmatpush2.bf16.msra.mxu0 0
      %604 = vmatprep.mubr.bf16.mxu0 0
      %605 = vmatmul.mubr.bf16.gmra.mxu0 %v561
      %v606 = vpop.f32.mrf.mxu0
      %v607 = vadd.f32 %v502, %v606
      %v608 = vpop.f32.mrf.mxu0
      %v609 = vadd.f32 %v504, %v608
      %v610 = vpop.f32.mrf.mxu0
      %v611 = vadd.f32 %v506, %v610
      %v612 = vpop.f32.mrf.mxu0
      %v613 = vadd.f32 %v508, %v612
      %614 = vmatprep.mubr.bf16.mxu0 0
      %615 = vmatmul.mubr.bf16.gmra.mxu0 %v564
      %v616 = vpop.f32.mrf.mxu0
      %v617 = vadd.f32 %v512, %v616
      %v618 = vpop.f32.mrf.mxu0
      %v619 = vadd.f32 %v514, %v618
      %v620 = vpop.f32.mrf.mxu0
      %v621 = vadd.f32 %v516, %v620
      %v622 = vpop.f32.mrf.mxu0
      %v623 = vadd.f32 %v518, %v622
      %624 = vmatprep.mubr.bf16.mxu0 0
      %625 = vmatmul.mubr.bf16.gmra.mxu0 %v567
      %v626 = vpop.f32.mrf.mxu0
      %v627 = vadd.f32 %v522, %v626
      %v628 = vpop.f32.mrf.mxu0
      %v629 = vadd.f32 %v524, %v628
      %v630 = vpop.f32.mrf.mxu0
      %v631 = vadd.f32 %v526, %v630
      %v632 = vpop.f32.mrf.mxu0
      %v633 = vadd.f32 %v528, %v632
      %634 = vmatprep.mubr.bf16.mxu0 0
      %635 = vmatmul.mubr.bf16.gmra.mxu0 %v570
      %v636 = vpop.f32.mrf.mxu0
      %v637 = vadd.f32 %v532, %v636
      %v638 = vpop.f32.mrf.mxu0
      %v639 = vadd.f32 %v534, %v638
      %v640 = vpop.f32.mrf.mxu0
      %v641 = vadd.f32 %v536, %v640
      %v642 = vpop.f32.mrf.mxu0
      %v643 = vadd.f32 %v538, %v642
      %644 = vdwg.mxu0
      %645 = vrot.lane.b32.xlu0 %v288, 15
      %v646 = vpop.permute.xlu0 %645
      %647 = vrot.lane.b32.xlu0 %v289, 15
      %v648 = vpop.permute.xlu0 %647
      %649 = vrot.lane.b32.xlu0 %v290, 15
      %v650 = vpop.permute.xlu0 %649
      %651 = vrot.lane.b32.xlu0 %v291, 15
      %v652 = vpop.permute.xlu0 %651
      %vm653 = vcmask 121856
      %v654 = vsel %vm653, %v646, %v648
      %v655 = vsel %vm653, %v650, %v652
      %vm658 = vcmask 121856
      %v660 = vsel %vm658, 0, %v646
      %v663 = vsel %vm658, 0, %v650
      %v665 = vmul.bf16 %v660, %v360
      %v666 = vmul.bf16 %v654, %v367
      %v667 = vmul.bf16 %v663, %v360
      %v668 = vmul.bf16 %v655, %v367
      %s669 = scalar_lea.vmem %s1, 64
      %v670 = vld [vmem:[%s669] sm:$0xf]
      %v671 = vld [vmem:[%s669 + $0x4] sm:$0xf]
      %v672 = vld [vmem:[%s669 + $0x8] sm:$0xf]
      %v673 = vld [vmem:[%s669 + $0xc] sm:$0xf]
      %v674 = vld [vmem:[%s669 + $0x10] sm:$0xf]
      %v675 = vld [vmem:[%s669 + $0x14] sm:$0xf]
      %v676 = vld [vmem:[%s669 + $0x18] sm:$0xf]
      %v677 = vld [vmem:[%s669 + $0x1c] sm:$0xf]
      %v686 = vunpack.c.l.b16 %v670
      %v687 = vunpack.c.l.b16 %v671
      %v688 = vunpack.c.l.b16 %v672
      %v689 = vunpack.c.l.b16 %v673
      %v690 = vunpack.c.l.b16 %v674
      %v691 = vunpack.c.l.b16 %v675
      %v692 = vunpack.c.l.b16 %v676
      %v693 = vunpack.c.l.b16 %v677
      %v694 = vpack.c.b16 %v687, %v686
      %v695 = vpack.c.b16 %v689, %v688
      %v696 = vpack.c.b16 %v691, %v690
      %v697 = vpack.c.b16 %v693, %v692
      %v699 = vsel %vm454, %v694, 0
      %v702 = vsel %vm454, %v695, 0
      %v705 = vsel %vm454, %v696, 0
      %v708 = vsel %vm454, %v697, 0
      %710 = vmatprep.subr.bf16.mxu0 0
      %711 = vmatpush1.bf16.msra.mxu0 0
      %712 = vmatprep.subr.bf16.mxu0 0
      %713 = vmatpush1.bf16.msra.mxu0 0
      %714 = vmatprep.subr.bf16.mxu0 0
      %715 = vmatpush1.bf16.msra.mxu0 0
      %716 = vmatprep.subr.bf16.mxu0 0
      %717 = vmatpush1.bf16.msra.mxu0 0
      %718 = vmatprep.subr.bf16.mxu0 0
      %719 = vmatpush1.bf16.msra.mxu0 0
      %720 = vmatprep.subr.bf16.mxu0 0
      %721 = vmatpush1.bf16.msra.mxu0 0
      %722 = vmatprep.subr.bf16.mxu0 %v668
      %723 = vmatpush1.bf16.msra.mxu0 %v667
      %724 = vmatprep.subr.bf16.mxu0 %v666
      %725 = vmatpush1.bf16.msra.mxu0 %v665
      %726 = vmatprep.subr.bf16.mxu0 0
      %727 = vmatpush2.bf16.msra.mxu0 0
      %728 = vmatprep.subr.bf16.mxu0 0
      %729 = vmatpush2.bf16.msra.mxu0 0
      %730 = vmatprep.subr.bf16.mxu0 0
      %731 = vmatpush2.bf16.msra.mxu0 0
      %732 = vmatprep.subr.bf16.mxu0 0
      %733 = vmatpush2.bf16.msra.mxu0 0
      %734 = vmatprep.subr.bf16.mxu0 0
      %735 = vmatpush2.bf16.msra.mxu0 0
      %736 = vmatprep.subr.bf16.mxu0 0
      %737 = vmatpush2.bf16.msra.mxu0 0
      %738 = vmatprep.subr.bf16.mxu0 0
      %739 = vmatpush2.bf16.msra.mxu0 0
      %740 = vmatprep.subr.bf16.mxu0 0
      %741 = vmatpush2.bf16.msra.mxu0 0
      %742 = vmatprep.mubr.bf16.mxu0 0
      %743 = vmatmul.mubr.bf16.gmra.mxu0 %v699
      %v744 = vpop.f32.mrf.mxu0
      %v745 = vadd.f32 0.0, %v744
      %v746 = vpop.f32.mrf.mxu0
      %v747 = vadd.f32 0.0, %v746
      %v748 = vpop.f32.mrf.mxu0
      %v749 = vadd.f32 0.0, %v748
      %v750 = vpop.f32.mrf.mxu0
      %v751 = vadd.f32 0.0, %v750
      %752 = vmatprep.mubr.bf16.mxu0 0
      %753 = vmatmul.mubr.bf16.gmra.mxu0 %v702
      %v754 = vpop.f32.mrf.mxu0
      %v755 = vadd.f32 0.0, %v754
      %v756 = vpop.f32.mrf.mxu0
      %v757 = vadd.f32 0.0, %v756
      %v758 = vpop.f32.mrf.mxu0
      %v759 = vadd.f32 0.0, %v758
      %v760 = vpop.f32.mrf.mxu0
      %v761 = vadd.f32 0.0, %v760
      %762 = vmatprep.mubr.bf16.mxu0 0
      %763 = vmatmul.mubr.bf16.gmra.mxu0 %v705
      %v764 = vpop.f32.mrf.mxu0
      %v765 = vadd.f32 0.0, %v764
      %v766 = vpop.f32.mrf.mxu0
      %v767 = vadd.f32 0.0, %v766
      %v768 = vpop.f32.mrf.mxu0
      %v769 = vadd.f32 0.0, %v768
      %v770 = vpop.f32.mrf.mxu0
      %v771 = vadd.f32 0.0, %v770
      %772 = vmatprep.mubr.bf16.mxu0 0
      %773 = vmatmul.mubr.bf16.gmra.mxu0 %v708
      %v774 = vpop.f32.mrf.mxu0
      %v775 = vadd.f32 0.0, %v774
      %v776 = vpop.f32.mrf.mxu0
      %v777 = vadd.f32 0.0, %v776
      %v778 = vpop.f32.mrf.mxu0
      %v779 = vadd.f32 0.0, %v778
      %v780 = vpop.f32.mrf.mxu0
      %v781 = vadd.f32 0.0, %v780
      %782 = vdwg.mxu0
      %v783 = vadd.f32 %v607, %v745
      %v784 = vadd.f32 %v609, %v747
      %v785 = vadd.f32 %v611, %v749
      %v786 = vadd.f32 %v613, %v751
      %v787 = vadd.f32 %v617, %v755
      %v788 = vadd.f32 %v619, %v757
      %v789 = vadd.f32 %v621, %v759
      %v790 = vadd.f32 %v623, %v761
      %v791 = vadd.f32 %v627, %v765
      %v792 = vadd.f32 %v629, %v767
      %v793 = vadd.f32 %v631, %v769
      %v794 = vadd.f32 %v633, %v771
      %v795 = vadd.f32 %v637, %v775
      %v796 = vadd.f32 %v639, %v777
      %v797 = vadd.f32 %v641, %v779
      %v798 = vadd.f32 %v643, %v781
      %799 = vrot.lane.b32.xlu0 %v288, 1
      %v800 = vpop.permute.xlu0 %799
      %801 = vrot.lane.b32.xlu0 %v289, 1
      %v802 = vpop.permute.xlu0 %801
      %803 = vrot.lane.b32.xlu0 %v290, 1
      %v804 = vpop.permute.xlu0 %803
      %805 = vrot.lane.b32.xlu0 %v291, 1
      %v806 = vpop.permute.xlu0 %805
      %vm807 = vcmask 7168
      %v808 = vsel %vm807, %v800, %v802
      %v809 = vsel %vm807, %v804, %v806
      %vm812 = vcmask 7168
      %v814 = vsel %vm812, 0, %v800
      %v817 = vsel %vm812, 0, %v804
      %v819 = vmul.bf16 %v814, %v322
      %v820 = vmul.bf16 %v808, %v329
      %v821 = vmul.bf16 %v817, %v322
      %v822 = vmul.bf16 %v809, %v329
      %s823 = scalar_lea.vmem %s1, 96
      %v824 = vld [vmem:[%s823] sm:$0xf]
      %v825 = vld [vmem:[%s823 + $0x4] sm:$0xf]
      %v826 = vld [vmem:[%s823 + $0x8] sm:$0xf]
      %v827 = vld [vmem:[%s823 + $0xc] sm:$0xf]
      %v828 = vld [vmem:[%s823 + $0x10] sm:$0xf]
      %v829 = vld [vmem:[%s823 + $0x14] sm:$0xf]
      %v830 = vld [vmem:[%s823 + $0x18] sm:$0xf]
      %v831 = vld [vmem:[%s823 + $0x1c] sm:$0xf]
      %v840 = vunpack.c.l.b16 %v824
      %v841 = vunpack.c.l.b16 %v825
      %v842 = vunpack.c.l.b16 %v826
      %v843 = vunpack.c.l.b16 %v827
      %v844 = vunpack.c.l.b16 %v828
      %v845 = vunpack.c.l.b16 %v829
      %v846 = vunpack.c.l.b16 %v830
      %v847 = vunpack.c.l.b16 %v831
      %v848 = vpack.c.b16 %v841, %v840
      %v849 = vpack.c.b16 %v843, %v842
      %v850 = vpack.c.b16 %v845, %v844
      %v851 = vpack.c.b16 %v847, %v846
      %v853 = vsel %vm454, %v848, 0
      %v856 = vsel %vm454, %v849, 0
      %v859 = vsel %vm454, %v850, 0
      %v862 = vsel %vm454, %v851, 0
      %864 = vmatprep.subr.bf16.mxu0 0
      %865 = vmatpush1.bf16.msra.mxu0 0
      %866 = vmatprep.subr.bf16.mxu0 0
      %867 = vmatpush1.bf16.msra.mxu0 0
      %868 = vmatprep.subr.bf16.mxu0 0
      %869 = vmatpush1.bf16.msra.mxu0 0
      %870 = vmatprep.subr.bf16.mxu0 0
      %871 = vmatpush1.bf16.msra.mxu0 0
      %872 = vmatprep.subr.bf16.mxu0 0
      %873 = vmatpush1.bf16.msra.mxu0 0
      %874 = vmatprep.subr.bf16.mxu0 0
      %875 = vmatpush1.bf16.msra.mxu0 0
      %876 = vmatprep.subr.bf16.mxu0 %v822
      %877 = vmatpush1.bf16.msra.mxu0 %v821
      %878 = vmatprep.subr.bf16.mxu0 %v820
      %879 = vmatpush1.bf16.msra.mxu0 %v819
      %880 = vmatprep.subr.bf16.mxu0 0
      %881 = vmatpush2.bf16.msra.mxu0 0
      %882 = vmatprep.subr.bf16.mxu0 0
      %883 = vmatpush2.bf16.msra.mxu0 0
      %884 = vmatprep.subr.bf16.mxu0 0
      %885 = vmatpush2.bf16.msra.mxu0 0
      %886 = vmatprep.subr.bf16.mxu0 0
      %887 = vmatpush2.bf16.msra.mxu0 0
      %888 = vmatprep.subr.bf16.mxu0 0
      %889 = vmatpush2.bf16.msra.mxu0 0
      %890 = vmatprep.subr.bf16.mxu0 0
      %891 = vmatpush2.bf16.msra.mxu0 0
      %892 = vmatprep.subr.bf16.mxu0 0
      %893 = vmatpush2.bf16.msra.mxu0 0
      %894 = vmatprep.subr.bf16.mxu0 0
      %895 = vmatpush2.bf16.msra.mxu0 0
      %896 = vmatprep.mubr.bf16.mxu0 0
      %897 = vmatmul.mubr.bf16.gmra.mxu0 %v853
      %v898 = vpop.f32.mrf.mxu0
      %v899 = vadd.f32 0.0, %v898
      %v900 = vpop.f32.mrf.mxu0
      %v901 = vadd.f32 0.0, %v900
      %v902 = vpop.f32.mrf.mxu0
      %v903 = vadd.f32 0.0, %v902
      %v904 = vpop.f32.mrf.mxu0
      %v905 = vadd.f32 0.0, %v904
      %906 = vmatprep.mubr.bf16.mxu0 0
      %907 = vmatmul.mubr.bf16.gmra.mxu0 %v856
      %v908 = vpop.f32.mrf.mxu0
      %v909 = vadd.f32 0.0, %v908
      %v910 = vpop.f32.mrf.mxu0
      %v911 = vadd.f32 0.0, %v910
      %v912 = vpop.f32.mrf.mxu0
      %v913 = vadd.f32 0.0, %v912
      %v914 = vpop.f32.mrf.mxu0
      %v915 = vadd.f32 0.0, %v914
      %916 = vmatprep.mubr.bf16.mxu0 0
      %917 = vmatmul.mubr.bf16.gmra.mxu0 %v859
      %v918 = vpop.f32.mrf.mxu0
      %v919 = vadd.f32 0.0, %v918
      %v920 = vpop.f32.mrf.mxu0
      %v921 = vadd.f32 0.0, %v920
      %v922 = vpop.f32.mrf.mxu0
      %v923 = vadd.f32 0.0, %v922
      %v924 = vpop.f32.mrf.mxu0
      %v925 = vadd.f32 0.0, %v924
      %926 = vmatprep.mubr.bf16.mxu0 0
      %927 = vmatmul.mubr.bf16.gmra.mxu0 %v862
      %v928 = vpop.f32.mrf.mxu0
      %v929 = vadd.f32 0.0, %v928
      %v930 = vpop.f32.mrf.mxu0
      %v931 = vadd.f32 0.0, %v930
      %v932 = vpop.f32.mrf.mxu0
      %v933 = vadd.f32 0.0, %v932
      %v934 = vpop.f32.mrf.mxu0
      %v935 = vadd.f32 0.0, %v934
      %936 = vdwg.mxu0
      %v937 = vadd.f32 %v783, %v899
      %v938 = vadd.f32 %v784, %v901
      %v939 = vadd.f32 %v785, %v903
      %v940 = vadd.f32 %v786, %v905
      %v941 = vadd.f32 %v787, %v909
      %v942 = vadd.f32 %v788, %v911
      %v943 = vadd.f32 %v789, %v913
      %v944 = vadd.f32 %v790, %v915
      %v945 = vadd.f32 %v791, %v919
      %v946 = vadd.f32 %v792, %v921
      %v947 = vadd.f32 %v793, %v923
      %v948 = vadd.f32 %v794, %v925
      %v949 = vadd.f32 %v795, %v929
      %v950 = vadd.f32 %v796, %v931
      %v951 = vadd.f32 %v797, %v933
      %v952 = vadd.f32 %v798, %v935
      %s953 = scalar_lea.vmem %s1, 128
      %v954 = vld [vmem:[%s953] sm:$0xf]
      %v955 = vld [vmem:[%s953 + $0x4] sm:$0xf]
      %v956 = vld [vmem:[%s953 + $0x8] sm:$0xf]
      %v957 = vld [vmem:[%s953 + $0xc] sm:$0xf]
      %v958 = vld [vmem:[%s953 + $0x10] sm:$0xf]
      %v959 = vld [vmem:[%s953 + $0x14] sm:$0xf]
      %v960 = vld [vmem:[%s953 + $0x18] sm:$0xf]
      %v961 = vld [vmem:[%s953 + $0x1c] sm:$0xf]
      %v970 = vunpack.c.l.b16 %v954
      %v971 = vunpack.c.l.b16 %v955
      %v972 = vunpack.c.l.b16 %v956
      %v973 = vunpack.c.l.b16 %v957
      %v974 = vunpack.c.l.b16 %v958
      %v975 = vunpack.c.l.b16 %v959
      %v976 = vunpack.c.l.b16 %v960
      %v977 = vunpack.c.l.b16 %v961
      %v978 = vpack.c.b16 %v971, %v970
      %v979 = vpack.c.b16 %v973, %v972
      %v980 = vpack.c.b16 %v975, %v974
      %v981 = vpack.c.b16 %v977, %v976
      %v983 = vsel %vm454, %v978, 0
      %v986 = vsel %vm454, %v979, 0
      %v989 = vsel %vm454, %v980, 0
      %v992 = vsel %vm454, %v981, 0
      %994 = vmatprep.subr.bf16.mxu0 0
      %995 = vmatpush1.bf16.msra.mxu0 0
      %996 = vmatprep.subr.bf16.mxu0 0
      %997 = vmatpush1.bf16.msra.mxu0 0
      %998 = vmatprep.subr.bf16.mxu0 0
      %999 = vmatpush1.bf16.msra.mxu0 0
      %1000 = vmatprep.subr.bf16.mxu0 0
      %1001 = vmatpush1.bf16.msra.mxu0 0
      %1002 = vmatprep.subr.bf16.mxu0 0
      %1003 = vmatpush1.bf16.msra.mxu0 0
      %1004 = vmatprep.subr.bf16.mxu0 0
      %1005 = vmatpush1.bf16.msra.mxu0 0
      %1006 = vmatprep.subr.bf16.mxu0 %v291
      %1007 = vmatpush1.bf16.msra.mxu0 %v290
      %1008 = vmatprep.subr.bf16.mxu0 %v289
      %1009 = vmatpush1.bf16.msra.mxu0 %v288
      %1010 = vmatprep.subr.bf16.mxu0 0
      %1011 = vmatpush2.bf16.msra.mxu0 0
      %1012 = vmatprep.subr.bf16.mxu0 0
      %1013 = vmatpush2.bf16.msra.mxu0 0
      %1014 = vmatprep.subr.bf16.mxu0 0
      %1015 = vmatpush2.bf16.msra.mxu0 0
      %1016 = vmatprep.subr.bf16.mxu0 0
      %1017 = vmatpush2.bf16.msra.mxu0 0
      %1018 = vmatprep.subr.bf16.mxu0 0
      %1019 = vmatpush2.bf16.msra.mxu0 0
      %1020 = vmatprep.subr.bf16.mxu0 0
      %1021 = vmatpush2.bf16.msra.mxu0 0
      %1022 = vmatprep.subr.bf16.mxu0 0
      %1023 = vmatpush2.bf16.msra.mxu0 0
      %1024 = vmatprep.subr.bf16.mxu0 0
      %1025 = vmatpush2.bf16.msra.mxu0 0
      %1026 = vmatprep.mubr.bf16.mxu0 0
      %1027 = vmatmul.mubr.bf16.gmra.mxu0 %v983
      %v1028 = vpop.f32.mrf.mxu0
      %v1029 = vadd.f32 0.0, %v1028
      %v1030 = vpop.f32.mrf.mxu0
      %v1031 = vadd.f32 0.0, %v1030
      %v1032 = vpop.f32.mrf.mxu0
      %v1033 = vadd.f32 0.0, %v1032
      %v1034 = vpop.f32.mrf.mxu0
      %v1035 = vadd.f32 0.0, %v1034
      %1036 = vmatprep.mubr.bf16.mxu0 0
      %1037 = vmatmul.mubr.bf16.gmra.mxu0 %v986
      %v1038 = vpop.f32.mrf.mxu0
      %v1039 = vadd.f32 0.0, %v1038
      %v1040 = vpop.f32.mrf.mxu0
      %v1041 = vadd.f32 0.0, %v1040
      %v1042 = vpop.f32.mrf.mxu0
      %v1043 = vadd.f32 0.0, %v1042
      %v1044 = vpop.f32.mrf.mxu0
      %v1045 = vadd.f32 0.0, %v1044
      %1046 = vmatprep.mubr.bf16.mxu0 0
      %1047 = vmatmul.mubr.bf16.gmra.mxu0 %v989
      %v1048 = vpop.f32.mrf.mxu0
      %v1049 = vadd.f32 0.0, %v1048
      %v1050 = vpop.f32.mrf.mxu0
      %v1051 = vadd.f32 0.0, %v1050
      %v1052 = vpop.f32.mrf.mxu0
      %v1053 = vadd.f32 0.0, %v1052
      %v1054 = vpop.f32.mrf.mxu0
      %v1055 = vadd.f32 0.0, %v1054
      %1056 = vmatprep.mubr.bf16.mxu0 0
      %1057 = vmatmul.mubr.bf16.gmra.mxu0 %v992
      %v1058 = vpop.f32.mrf.mxu0
      %v1059 = vadd.f32 0.0, %v1058
      %v1060 = vpop.f32.mrf.mxu0
      %v1061 = vadd.f32 0.0, %v1060
      %v1062 = vpop.f32.mrf.mxu0
      %v1063 = vadd.f32 0.0, %v1062
      %v1064 = vpop.f32.mrf.mxu0
      %v1065 = vadd.f32 0.0, %v1064
      %1066 = vdwg.mxu0
      %v1067 = vadd.f32 %v937, %v1029
      %v1068 = vadd.f32 %v938, %v1031
      %v1069 = vadd.f32 %v939, %v1033
      %v1070 = vadd.f32 %v940, %v1035
      %v1071 = vadd.f32 %v941, %v1039
      %v1072 = vadd.f32 %v942, %v1041
      %v1073 = vadd.f32 %v943, %v1043
      %v1074 = vadd.f32 %v944, %v1045
      %v1075 = vadd.f32 %v945, %v1049
      %v1076 = vadd.f32 %v946, %v1051
      %v1077 = vadd.f32 %v947, %v1053
      %v1078 = vadd.f32 %v948, %v1055
      %v1079 = vadd.f32 %v949, %v1059
      %v1080 = vadd.f32 %v950, %v1061
      %v1081 = vadd.f32 %v951, %v1063
      %v1082 = vadd.f32 %v952, %v1065
      %1083 = vrot.lane.b32.xlu0 %v288, 127
      %v1084 = vpop.permute.xlu0 %1083
      %1085 = vrot.lane.b32.xlu0 %v289, 127
      %v1086 = vpop.permute.xlu0 %1085
      %1087 = vrot.lane.b32.xlu0 %v290, 127
      %v1088 = vpop.permute.xlu0 %1087
      %1089 = vrot.lane.b32.xlu0 %v291, 127
      %v1090 = vpop.permute.xlu0 %1089
      %vm1091 = vcmask 1039360
      %v1092 = vsel %vm1091, %v1084, %v1086
      %v1093 = vsel %vm1091, %v1088, %v1090
      %vm1096 = vcmask 1039360
      %v1098 = vsel %vm1096, %v1086, 0
      %v1101 = vsel %vm1096, %v1090, 0
      %v1103 = vmul.bf16 %v1092, %v360
      %v1104 = vmul.bf16 %v1098, %v367
      %v1105 = vmul.bf16 %v1093, %v360
      %v1106 = vmul.bf16 %v1101, %v367
      %s1107 = scalar_lea.vmem %s1, 160
      %v1108 = vld [vmem:[%s1107] sm:$0xf]
      %v1109 = vld [vmem:[%s1107 + $0x4] sm:$0xf]
      %v1110 = vld [vmem:[%s1107 + $0x8] sm:$0xf]
      %v1111 = vld [vmem:[%s1107 + $0xc] sm:$0xf]
      %v1112 = vld [vmem:[%s1107 + $0x10] sm:$0xf]
      %v1113 = vld [vmem:[%s1107 + $0x14] sm:$0xf]
      %v1114 = vld [vmem:[%s1107 + $0x18] sm:$0xf]
      %v1115 = vld [vmem:[%s1107 + $0x1c] sm:$0xf]
      %v1124 = vunpack.c.l.b16 %v1108
      %v1125 = vunpack.c.l.b16 %v1109
      %v1126 = vunpack.c.l.b16 %v1110
      %v1127 = vunpack.c.l.b16 %v1111
      %v1128 = vunpack.c.l.b16 %v1112
      %v1129 = vunpack.c.l.b16 %v1113
      %v1130 = vunpack.c.l.b16 %v1114
      %v1131 = vunpack.c.l.b16 %v1115
      %v1132 = vpack.c.b16 %v1125, %v1124
      %v1133 = vpack.c.b16 %v1127, %v1126
      %v1134 = vpack.c.b16 %v1129, %v1128
      %v1135 = vpack.c.b16 %v1131, %v1130
      %v1137 = vsel %vm454, %v1132, 0
      %v1140 = vsel %vm454, %v1133, 0
      %v1143 = vsel %vm454, %v1134, 0
      %v1146 = vsel %vm454, %v1135, 0
      %1148 = vmatprep.subr.bf16.mxu0 0
      %1149 = vmatpush1.bf16.msra.mxu0 0
      %1150 = vmatprep.subr.bf16.mxu0 0
      %1151 = vmatpush1.bf16.msra.mxu0 0
      %1152 = vmatprep.subr.bf16.mxu0 0
      %1153 = vmatpush1.bf16.msra.mxu0 0
      %1154 = vmatprep.subr.bf16.mxu0 0
      %1155 = vmatpush1.bf16.msra.mxu0 0
      %1156 = vmatprep.subr.bf16.mxu0 0
      %1157 = vmatpush1.bf16.msra.mxu0 0
      %1158 = vmatprep.subr.bf16.mxu0 0
      %1159 = vmatpush1.bf16.msra.mxu0 0
      %1160 = vmatprep.subr.bf16.mxu0 %v1106
      %1161 = vmatpush1.bf16.msra.mxu0 %v1105
      %1162 = vmatprep.subr.bf16.mxu0 %v1104
      %1163 = vmatpush1.bf16.msra.mxu0 %v1103
      %1164 = vmatprep.subr.bf16.mxu0 0
      %1165 = vmatpush2.bf16.msra.mxu0 0
      %1166 = vmatprep.subr.bf16.mxu0 0
      %1167 = vmatpush2.bf16.msra.mxu0 0
      %1168 = vmatprep.subr.bf16.mxu0 0
      %1169 = vmatpush2.bf16.msra.mxu0 0
      %1170 = vmatprep.subr.bf16.mxu0 0
      %1171 = vmatpush2.bf16.msra.mxu0 0
      %1172 = vmatprep.subr.bf16.mxu0 0
      %1173 = vmatpush2.bf16.msra.mxu0 0
      %1174 = vmatprep.subr.bf16.mxu0 0
      %1175 = vmatpush2.bf16.msra.mxu0 0
      %1176 = vmatprep.subr.bf16.mxu0 0
      %1177 = vmatpush2.bf16.msra.mxu0 0
      %1178 = vmatprep.subr.bf16.mxu0 0
      %1179 = vmatpush2.bf16.msra.mxu0 0
      %1180 = vmatprep.mubr.bf16.mxu0 0
      %1181 = vmatmul.mubr.bf16.gmra.mxu0 %v1137
      %v1182 = vpop.f32.mrf.mxu0
      %v1183 = vadd.f32 0.0, %v1182
      %v1184 = vpop.f32.mrf.mxu0
      %v1185 = vadd.f32 0.0, %v1184
      %v1186 = vpop.f32.mrf.mxu0
      %v1187 = vadd.f32 0.0, %v1186
      %v1188 = vpop.f32.mrf.mxu0
      %v1189 = vadd.f32 0.0, %v1188
      %1190 = vmatprep.mubr.bf16.mxu0 0
      %1191 = vmatmul.mubr.bf16.gmra.mxu0 %v1140
      %v1192 = vpop.f32.mrf.mxu0
      %v1193 = vadd.f32 0.0, %v1192
      %v1194 = vpop.f32.mrf.mxu0
      %v1195 = vadd.f32 0.0, %v1194
      %v1196 = vpop.f32.mrf.mxu0
      %v1197 = vadd.f32 0.0, %v1196
      %v1198 = vpop.f32.mrf.mxu0
      %v1199 = vadd.f32 0.0, %v1198
      %1200 = vmatprep.mubr.bf16.mxu0 0
      %1201 = vmatmul.mubr.bf16.gmra.mxu0 %v1143
      %v1202 = vpop.f32.mrf.mxu0
      %v1203 = vadd.f32 0.0, %v1202
      %v1204 = vpop.f32.mrf.mxu0
      %v1205 = vadd.f32 0.0, %v1204
      %v1206 = vpop.f32.mrf.mxu0
      %v1207 = vadd.f32 0.0, %v1206
      %v1208 = vpop.f32.mrf.mxu0
      %v1209 = vadd.f32 0.0, %v1208
      %1210 = vmatprep.mubr.bf16.mxu0 0
      %1211 = vmatmul.mubr.bf16.gmra.mxu0 %v1146
      %v1212 = vpop.f32.mrf.mxu0
      %v1213 = vadd.f32 0.0, %v1212
      %v1214 = vpop.f32.mrf.mxu0
      %v1215 = vadd.f32 0.0, %v1214
      %v1216 = vpop.f32.mrf.mxu0
      %v1217 = vadd.f32 0.0, %v1216
      %v1218 = vpop.f32.mrf.mxu0
      %v1219 = vadd.f32 0.0, %v1218
      %1220 = vdwg.mxu0
      %v1221 = vadd.f32 %v1067, %v1183
      %v1222 = vadd.f32 %v1068, %v1185
      %v1223 = vadd.f32 %v1069, %v1187
      %v1224 = vadd.f32 %v1070, %v1189
      %v1225 = vadd.f32 %v1071, %v1193
      %v1226 = vadd.f32 %v1072, %v1195
      %v1227 = vadd.f32 %v1073, %v1197
      %v1228 = vadd.f32 %v1074, %v1199
      %v1229 = vadd.f32 %v1075, %v1203
      %v1230 = vadd.f32 %v1076, %v1205
      %v1231 = vadd.f32 %v1077, %v1207
      %v1232 = vadd.f32 %v1078, %v1209
      %v1233 = vadd.f32 %v1079, %v1213
      %v1234 = vadd.f32 %v1080, %v1215
      %v1235 = vadd.f32 %v1081, %v1217
      %v1236 = vadd.f32 %v1082, %v1219
      %1237 = vrot.lane.b32.xlu0 %v288, 113
      %v1238 = vpop.permute.xlu0 %1237
      %1239 = vrot.lane.b32.xlu0 %v289, 113
      %v1240 = vpop.permute.xlu0 %1239
      %1241 = vrot.lane.b32.xlu0 %v290, 113
      %v1242 = vpop.permute.xlu0 %1241
      %1243 = vrot.lane.b32.xlu0 %v291, 113
      %v1244 = vpop.permute.xlu0 %1243
      %vm1245 = vcmask 924672
      %v1246 = vsel %vm1245, %v1238, %v1240
      %v1247 = vsel %vm1245, %v1242, %v1244
      %vm1250 = vcmask 924672
      %v1252 = vsel %vm1250, %v1240, 0
      %v1255 = vsel %vm1250, %v1244, 0
      %v1257 = vmul.bf16 %v1246, %v322
      %v1258 = vmul.bf16 %v1252, %v329
      %v1259 = vmul.bf16 %v1247, %v322
      %v1260 = vmul.bf16 %v1255, %v329
      %s1261 = scalar_lea.vmem %s1, 192
      %v1262 = vld [vmem:[%s1261] sm:$0xf]
      %v1263 = vld [vmem:[%s1261 + $0x4] sm:$0xf]
      %v1264 = vld [vmem:[%s1261 + $0x8] sm:$0xf]
      %v1265 = vld [vmem:[%s1261 + $0xc] sm:$0xf]
      %v1266 = vld [vmem:[%s1261 + $0x10] sm:$0xf]
      %v1267 = vld [vmem:[%s1261 + $0x14] sm:$0xf]
      %v1268 = vld [vmem:[%s1261 + $0x18] sm:$0xf]
      %v1269 = vld [vmem:[%s1261 + $0x1c] sm:$0xf]
      %v1278 = vunpack.c.l.b16 %v1262
      %v1279 = vunpack.c.l.b16 %v1263
      %v1280 = vunpack.c.l.b16 %v1264
      %v1281 = vunpack.c.l.b16 %v1265
      %v1282 = vunpack.c.l.b16 %v1266
      %v1283 = vunpack.c.l.b16 %v1267
      %v1284 = vunpack.c.l.b16 %v1268
      %v1285 = vunpack.c.l.b16 %v1269
      %v1286 = vpack.c.b16 %v1279, %v1278
      %v1287 = vpack.c.b16 %v1281, %v1280
      %v1288 = vpack.c.b16 %v1283, %v1282
      %v1289 = vpack.c.b16 %v1285, %v1284
      %v1291 = vsel %vm454, %v1286, 0
      %v1294 = vsel %vm454, %v1287, 0
      %v1297 = vsel %vm454, %v1288, 0
      %v1300 = vsel %vm454, %v1289, 0
      %1302 = vmatprep.subr.bf16.mxu0 0
      %1303 = vmatpush1.bf16.msra.mxu0 0
      %1304 = vmatprep.subr.bf16.mxu0 0
      %1305 = vmatpush1.bf16.msra.mxu0 0
      %1306 = vmatprep.subr.bf16.mxu0 0
      %1307 = vmatpush1.bf16.msra.mxu0 0
      %1308 = vmatprep.subr.bf16.mxu0 0
      %1309 = vmatpush1.bf16.msra.mxu0 0
      %1310 = vmatprep.subr.bf16.mxu0 0
      %1311 = vmatpush1.bf16.msra.mxu0 0
      %1312 = vmatprep.subr.bf16.mxu0 0
      %1313 = vmatpush1.bf16.msra.mxu0 0
      %1314 = vmatprep.subr.bf16.mxu0 %v1260
      %1315 = vmatpush1.bf16.msra.mxu0 %v1259
      %1316 = vmatprep.subr.bf16.mxu0 %v1258
      %1317 = vmatpush1.bf16.msra.mxu0 %v1257
      %1318 = vmatprep.subr.bf16.mxu0 0
      %1319 = vmatpush2.bf16.msra.mxu0 0
      %1320 = vmatprep.subr.bf16.mxu0 0
      %1321 = vmatpush2.bf16.msra.mxu0 0
      %1322 = vmatprep.subr.bf16.mxu0 0
      %1323 = vmatpush2.bf16.msra.mxu0 0
      %1324 = vmatprep.subr.bf16.mxu0 0
      %1325 = vmatpush2.bf16.msra.mxu0 0
      %1326 = vmatprep.subr.bf16.mxu0 0
      %1327 = vmatpush2.bf16.msra.mxu0 0
      %1328 = vmatprep.subr.bf16.mxu0 0
      %1329 = vmatpush2.bf16.msra.mxu0 0
      %1330 = vmatprep.subr.bf16.mxu0 0
      %1331 = vmatpush2.bf16.msra.mxu0 0
      %1332 = vmatprep.subr.bf16.mxu0 0
      %1333 = vmatpush2.bf16.msra.mxu0 0
      %1334 = vmatprep.mubr.bf16.mxu0 0
      %1335 = vmatmul.mubr.bf16.gmra.mxu0 %v1291
      %v1336 = vpop.f32.mrf.mxu0
      %v1337 = vadd.f32 0.0, %v1336
      %v1338 = vpop.f32.mrf.mxu0
      %v1339 = vadd.f32 0.0, %v1338
      %v1340 = vpop.f32.mrf.mxu0
      %v1341 = vadd.f32 0.0, %v1340
      %v1342 = vpop.f32.mrf.mxu0
      %v1343 = vadd.f32 0.0, %v1342
      %1344 = vmatprep.mubr.bf16.mxu0 0
      %1345 = vmatmul.mubr.bf16.gmra.mxu0 %v1294
      %v1346 = vpop.f32.mrf.mxu0
      %v1347 = vadd.f32 0.0, %v1346
      %v1348 = vpop.f32.mrf.mxu0
      %v1349 = vadd.f32 0.0, %v1348
      %v1350 = vpop.f32.mrf.mxu0
      %v1351 = vadd.f32 0.0, %v1350
      %v1352 = vpop.f32.mrf.mxu0
      %v1353 = vadd.f32 0.0, %v1352
      %1354 = vmatprep.mubr.bf16.mxu0 0
      %1355 = vmatmul.mubr.bf16.gmra.mxu0 %v1297
      %v1356 = vpop.f32.mrf.mxu0
      %v1357 = vadd.f32 0.0, %v1356
      %v1358 = vpop.f32.mrf.mxu0
      %v1359 = vadd.f32 0.0, %v1358
      %v1360 = vpop.f32.mrf.mxu0
      %v1361 = vadd.f32 0.0, %v1360
      %v1362 = vpop.f32.mrf.mxu0
      %v1363 = vadd.f32 0.0, %v1362
      %1364 = vmatprep.mubr.bf16.mxu0 0
      %1365 = vmatmul.mubr.bf16.gmra.mxu0 %v1300
      %v1366 = vpop.f32.mrf.mxu0
      %v1367 = vadd.f32 0.0, %v1366
      %v1368 = vpop.f32.mrf.mxu0
      %v1369 = vadd.f32 0.0, %v1368
      %v1370 = vpop.f32.mrf.mxu0
      %v1371 = vadd.f32 0.0, %v1370
      %v1372 = vpop.f32.mrf.mxu0
      %v1373 = vadd.f32 0.0, %v1372
      %1374 = vdwg.mxu0
      %v1375 = vadd.f32 %v1221, %v1337
      %v1376 = vadd.f32 %v1222, %v1339
      %v1377 = vadd.f32 %v1223, %v1341
      %v1378 = vadd.f32 %v1224, %v1343
      %v1379 = vadd.f32 %v1225, %v1347
      %v1380 = vadd.f32 %v1226, %v1349
      %v1381 = vadd.f32 %v1227, %v1351
      %v1382 = vadd.f32 %v1228, %v1353
      %v1383 = vadd.f32 %v1229, %v1357
      %v1384 = vadd.f32 %v1230, %v1359
      %v1385 = vadd.f32 %v1231, %v1361
      %v1386 = vadd.f32 %v1232, %v1363
      %v1387 = vadd.f32 %v1233, %v1367
      %v1388 = vadd.f32 %v1234, %v1369
      %v1389 = vadd.f32 %v1235, %v1371
      %v1390 = vadd.f32 %v1236, %v1373
      %1391 = vrot.lane.b32.xlu0 %v288, 112
      %v1392 = vpop.permute.xlu0 %1391
      %1393 = vrot.lane.b32.xlu0 %v289, 112
      %v1394 = vpop.permute.xlu0 %1393
      %1395 = vrot.lane.b32.xlu0 %v290, 112
      %v1396 = vpop.permute.xlu0 %1395
      %1397 = vrot.lane.b32.xlu0 %v291, 112
      %v1398 = vpop.permute.xlu0 %1397
      %vm1399 = vcmask 916480
      %v1400 = vsel %vm1399, %v1392, %v1394
      %v1401 = vsel %vm1399, %v1396, %v1398
      %vm1404 = vcmask 916480
      %v1406 = vsel %vm1404, %v1394, 0
      %v1409 = vsel %vm1404, %v1398, 0
      %s1411 = scalar_lea.vmem %s1, 224
      %v1412 = vld [vmem:[%s1411] sm:$0xf]
      %v1413 = vld [vmem:[%s1411 + $0x4] sm:$0xf]
      %v1414 = vld [vmem:[%s1411 + $0x8] sm:$0xf]
      %v1415 = vld [vmem:[%s1411 + $0xc] sm:$0xf]
      %v1416 = vld [vmem:[%s1411 + $0x10] sm:$0xf]
      %v1417 = vld [vmem:[%s1411 + $0x14] sm:$0xf]
      %v1418 = vld [vmem:[%s1411 + $0x18] sm:$0xf]
      %v1419 = vld [vmem:[%s1411 + $0x1c] sm:$0xf]
      %v1428 = vunpack.c.l.b16 %v1412
      %v1429 = vunpack.c.l.b16 %v1413
      %v1430 = vunpack.c.l.b16 %v1414
      %v1431 = vunpack.c.l.b16 %v1415
      %v1432 = vunpack.c.l.b16 %v1416
      %v1433 = vunpack.c.l.b16 %v1417
      %v1434 = vunpack.c.l.b16 %v1418
      %v1435 = vunpack.c.l.b16 %v1419
      %v1436 = vpack.c.b16 %v1429, %v1428
      %v1437 = vpack.c.b16 %v1431, %v1430
      %v1438 = vpack.c.b16 %v1433, %v1432
      %v1439 = vpack.c.b16 %v1435, %v1434
      %v1441 = vsel %vm454, %v1436, 0
      %v1444 = vsel %vm454, %v1437, 0
      %v1447 = vsel %vm454, %v1438, 0
      %v1450 = vsel %vm454, %v1439, 0
      %1452 = vmatprep.subr.bf16.mxu0 0
      %1453 = vmatpush1.bf16.msra.mxu0 0
      %1454 = vmatprep.subr.bf16.mxu0 0
      %1455 = vmatpush1.bf16.msra.mxu0 0
      %1456 = vmatprep.subr.bf16.mxu0 0
      %1457 = vmatpush1.bf16.msra.mxu0 0
      %1458 = vmatprep.subr.bf16.mxu0 0
      %1459 = vmatpush1.bf16.msra.mxu0 0
      %1460 = vmatprep.subr.bf16.mxu0 0
      %1461 = vmatpush1.bf16.msra.mxu0 0
      %1462 = vmatprep.subr.bf16.mxu0 0
      %1463 = vmatpush1.bf16.msra.mxu0 0
      %1464 = vmatprep.subr.bf16.mxu0 %v1409
      %1465 = vmatpush1.bf16.msra.mxu0 %v1401
      %1466 = vmatprep.subr.bf16.mxu0 %v1406
      %1467 = vmatpush1.bf16.msra.mxu0 %v1400
      %1468 = vmatprep.subr.bf16.mxu0 0
      %1469 = vmatpush2.bf16.msra.mxu0 0
      %1470 = vmatprep.subr.bf16.mxu0 0
      %1471 = vmatpush2.bf16.msra.mxu0 0
      %1472 = vmatprep.subr.bf16.mxu0 0
      %1473 = vmatpush2.bf16.msra.mxu0 0
      %1474 = vmatprep.subr.bf16.mxu0 0
      %1475 = vmatpush2.bf16.msra.mxu0 0
      %1476 = vmatprep.subr.bf16.mxu0 0
      %1477 = vmatpush2.bf16.msra.mxu0 0
      %1478 = vmatprep.subr.bf16.mxu0 0
      %1479 = vmatpush2.bf16.msra.mxu0 0
      %1480 = vmatprep.subr.bf16.mxu0 0
      %1481 = vmatpush2.bf16.msra.mxu0 0
      %1482 = vmatprep.subr.bf16.mxu0 0
      %1483 = vmatpush2.bf16.msra.mxu0 0
      %1484 = vmatprep.mubr.bf16.mxu0 0
      %1485 = vmatmul.mubr.bf16.gmra.mxu0 %v1441
      %v1486 = vpop.f32.mrf.mxu0
      %v1487 = vadd.f32 0.0, %v1486
      %v1488 = vpop.f32.mrf.mxu0
      %v1489 = vadd.f32 0.0, %v1488
      %v1490 = vpop.f32.mrf.mxu0
      %v1491 = vadd.f32 0.0, %v1490
      %v1492 = vpop.f32.mrf.mxu0
      %v1493 = vadd.f32 0.0, %v1492
      %1494 = vmatprep.mubr.bf16.mxu0 0
      %1495 = vmatmul.mubr.bf16.gmra.mxu0 %v1444
      %v1496 = vpop.f32.mrf.mxu0
      %v1497 = vadd.f32 0.0, %v1496
      %v1498 = vpop.f32.mrf.mxu0
      %v1499 = vadd.f32 0.0, %v1498
      %v1500 = vpop.f32.mrf.mxu0
      %v1501 = vadd.f32 0.0, %v1500
      %v1502 = vpop.f32.mrf.mxu0
      %v1503 = vadd.f32 0.0, %v1502
      %1504 = vmatprep.mubr.bf16.mxu0 0
      %1505 = vmatmul.mubr.bf16.gmra.mxu0 %v1447
      %v1506 = vpop.f32.mrf.mxu0
      %v1507 = vadd.f32 0.0, %v1506
      %v1508 = vpop.f32.mrf.mxu0
      %v1509 = vadd.f32 0.0, %v1508
      %v1510 = vpop.f32.mrf.mxu0
      %v1511 = vadd.f32 0.0, %v1510
      %v1512 = vpop.f32.mrf.mxu0
      %v1513 = vadd.f32 0.0, %v1512
      %1514 = vmatprep.mubr.bf16.mxu0 0
      %1515 = vmatmul.mubr.bf16.gmra.mxu0 %v1450
      %v1516 = vpop.f32.mrf.mxu0
      %v1517 = vadd.f32 0.0, %v1516
      %v1518 = vpop.f32.mrf.mxu0
      %v1519 = vadd.f32 0.0, %v1518
      %v1520 = vpop.f32.mrf.mxu0
      %v1521 = vadd.f32 0.0, %v1520
      %v1522 = vpop.f32.mrf.mxu0
      %v1523 = vadd.f32 0.0, %v1522
      %1524 = vdwg.mxu0
      %v1525 = vadd.f32 %v1375, %v1487
      %v1526 = vadd.f32 %v1376, %v1489
      %v1527 = vadd.f32 %v1377, %v1491
      %v1528 = vadd.f32 %v1378, %v1493
      %v1529 = vadd.f32 %v1379, %v1497
      %v1530 = vadd.f32 %v1380, %v1499
      %v1531 = vadd.f32 %v1381, %v1501
      %v1532 = vadd.f32 %v1382, %v1503
      %v1533 = vadd.f32 %v1383, %v1507
      %v1534 = vadd.f32 %v1384, %v1509
      %v1535 = vadd.f32 %v1385, %v1511
      %v1536 = vadd.f32 %v1386, %v1513
      %v1537 = vadd.f32 %v1387, %v1517
      %v1538 = vadd.f32 %v1388, %v1519
      %v1539 = vadd.f32 %v1389, %v1521
      %v1540 = vadd.f32 %v1390, %v1523
      %1541 = vrot.lane.b32.xlu0 %v288, 111
      %v1542 = vpop.permute.xlu0 %1541
      %1543 = vrot.lane.b32.xlu0 %v289, 111
      %v1544 = vpop.permute.xlu0 %1543
      %1545 = vrot.lane.b32.xlu0 %v290, 111
      %v1546 = vpop.permute.xlu0 %1545
      %1547 = vrot.lane.b32.xlu0 %v291, 111
      %v1548 = vpop.permute.xlu0 %1547
      %vm1549 = vcmask 908288
      %v1550 = vsel %vm1549, %v1542, %v1544
      %v1551 = vsel %vm1549, %v1546, %v1548
      %vm1554 = vcmask 908288
      %v1556 = vsel %vm1554, %v1544, 0
      %v1559 = vsel %vm1554, %v1548, 0
      %v1561 = vmul.bf16 %v1550, %v360
      %v1562 = vmul.bf16 %v1556, %v367
      %v1563 = vmul.bf16 %v1551, %v360
      %v1564 = vmul.bf16 %v1559, %v367
      %s1565 = scalar_lea.vmem %s1, 256
      %v1566 = vld [vmem:[%s1565] sm:$0xf]
      %v1567 = vld [vmem:[%s1565 + $0x4] sm:$0xf]
      %v1568 = vld [vmem:[%s1565 + $0x8] sm:$0xf]
      %v1569 = vld [vmem:[%s1565 + $0xc] sm:$0xf]
      %v1570 = vld [vmem:[%s1565 + $0x10] sm:$0xf]
      %v1571 = vld [vmem:[%s1565 + $0x14] sm:$0xf]
      %v1572 = vld [vmem:[%s1565 + $0x18] sm:$0xf]
      %v1573 = vld [vmem:[%s1565 + $0x1c] sm:$0xf]
      %v1582 = vunpack.c.l.b16 %v1566
      %v1583 = vunpack.c.l.b16 %v1567
      %v1584 = vunpack.c.l.b16 %v1568
      %v1585 = vunpack.c.l.b16 %v1569
      %v1586 = vunpack.c.l.b16 %v1570
      %v1587 = vunpack.c.l.b16 %v1571
      %v1588 = vunpack.c.l.b16 %v1572
      %v1589 = vunpack.c.l.b16 %v1573
      %v1590 = vpack.c.b16 %v1583, %v1582
      %v1591 = vpack.c.b16 %v1585, %v1584
      %v1592 = vpack.c.b16 %v1587, %v1586
      %v1593 = vpack.c.b16 %v1589, %v1588
      %v1595 = vsel %vm454, %v1590, 0
      %v1598 = vsel %vm454, %v1591, 0
      %v1601 = vsel %vm454, %v1592, 0
      %v1604 = vsel %vm454, %v1593, 0
      %1606 = vmatprep.subr.bf16.mxu0 0
      %1607 = vmatpush1.bf16.msra.mxu0 0
      %1608 = vmatprep.subr.bf16.mxu0 0
      %1609 = vmatpush1.bf16.msra.mxu0 0
      %1610 = vmatprep.subr.bf16.mxu0 0
      %1611 = vmatpush1.bf16.msra.mxu0 0
      %1612 = vmatprep.subr.bf16.mxu0 0
      %1613 = vmatpush1.bf16.msra.mxu0 0
      %1614 = vmatprep.subr.bf16.mxu0 0
      %1615 = vmatpush1.bf16.msra.mxu0 0
      %1616 = vmatprep.subr.bf16.mxu0 0
      %1617 = vmatpush1.bf16.msra.mxu0 0
      %1618 = vmatprep.subr.bf16.mxu0 %v1564
      %1619 = vmatpush1.bf16.msra.mxu0 %v1563
      %1620 = vmatprep.subr.bf16.mxu0 %v1562
      %1621 = vmatpush1.bf16.msra.mxu0 %v1561
      %1622 = vmatprep.subr.bf16.mxu0 0
      %1623 = vmatpush2.bf16.msra.mxu0 0
      %1624 = vmatprep.subr.bf16.mxu0 0
      %1625 = vmatpush2.bf16.msra.mxu0 0
      %1626 = vmatprep.subr.bf16.mxu0 0
      %1627 = vmatpush2.bf16.msra.mxu0 0
      %1628 = vmatprep.subr.bf16.mxu0 0
      %1629 = vmatpush2.bf16.msra.mxu0 0
      %1630 = vmatprep.subr.bf16.mxu0 0
      %1631 = vmatpush2.bf16.msra.mxu0 0
      %1632 = vmatprep.subr.bf16.mxu0 0
      %1633 = vmatpush2.bf16.msra.mxu0 0
      %1634 = vmatprep.subr.bf16.mxu0 0
      %1635 = vmatpush2.bf16.msra.mxu0 0
      %1636 = vmatprep.subr.bf16.mxu0 0
      %1637 = vmatpush2.bf16.msra.mxu0 0
      %1638 = vmatprep.mubr.bf16.mxu0 0
      %1639 = vmatmul.mubr.bf16.gmra.mxu0 %v1595
      %v1640 = vpop.f32.mrf.mxu0
      %v1641 = vadd.f32 0.0, %v1640
      %v1642 = vpop.f32.mrf.mxu0
      %v1643 = vadd.f32 0.0, %v1642
      %v1644 = vpop.f32.mrf.mxu0
      %v1645 = vadd.f32 0.0, %v1644
      %v1646 = vpop.f32.mrf.mxu0
      %v1647 = vadd.f32 0.0, %v1646
      %1648 = vmatprep.mubr.bf16.mxu0 0
      %1649 = vmatmul.mubr.bf16.gmra.mxu0 %v1598
      %v1650 = vpop.f32.mrf.mxu0
      %v1651 = vadd.f32 0.0, %v1650
      %v1652 = vpop.f32.mrf.mxu0
      %v1653 = vadd.f32 0.0, %v1652
      %v1654 = vpop.f32.mrf.mxu0
      %v1655 = vadd.f32 0.0, %v1654
      %v1656 = vpop.f32.mrf.mxu0
      %v1657 = vadd.f32 0.0, %v1656
      %1658 = vmatprep.mubr.bf16.mxu0 0
      %1659 = vmatmul.mubr.bf16.gmra.mxu0 %v1601
      %v1660 = vpop.f32.mrf.mxu0
      %v1661 = vadd.f32 0.0, %v1660
      %v1662 = vpop.f32.mrf.mxu0
      %v1663 = vadd.f32 0.0, %v1662
      %v1664 = vpop.f32.mrf.mxu0
      %v1665 = vadd.f32 0.0, %v1664
      %v1666 = vpop.f32.mrf.mxu0
      %v1667 = vadd.f32 0.0, %v1666
      %1668 = vmatprep.mubr.bf16.mxu0 0
      %1669 = vmatmul.mubr.bf16.gmra.mxu0 %v1604
      %v1670 = vpop.f32.mrf.mxu0
      %v1671 = vadd.f32 0.0, %v1670
      %v1672 = vpop.f32.mrf.mxu0
      %v1673 = vadd.f32 0.0, %v1672
      %v1674 = vpop.f32.mrf.mxu0
      %v1675 = vadd.f32 0.0, %v1674
      %v1676 = vpop.f32.mrf.mxu0
      %v1677 = vadd.f32 0.0, %v1676
      %1678 = vdwg.mxu0
      %v1679 = vadd.f32 %v1525, %v1641
      %v1680 = vadd.f32 %v1526, %v1643
      %v1681 = vadd.f32 %v1527, %v1645
      %v1682 = vadd.f32 %v1528, %v1647
      %v1683 = vadd.f32 %v1529, %v1651
      %v1684 = vadd.f32 %v1530, %v1653
      %v1685 = vadd.f32 %v1531, %v1655
      %v1686 = vadd.f32 %v1532, %v1657
      %v1687 = vadd.f32 %v1533, %v1661
      %v1688 = vadd.f32 %v1534, %v1663
      %v1689 = vadd.f32 %v1535, %v1665
      %v1690 = vadd.f32 %v1536, %v1667
      %v1691 = vadd.f32 %v1537, %v1671
      %v1692 = vadd.f32 %v1538, %v1673
      %v1693 = vadd.f32 %v1539, %v1675
      %v1694 = vadd.f32 %v1540, %v1677
      %v1695 = vld [vmem:[%s2] sm:$0xff]
      %v1696 = vld [vmem:[%s2 + $0x8] sm:$0xff]
      %v1697 = vld [vmem:[%s2 + $0x10] sm:$0xff]
      %v1698 = vld [vmem:[%s2 + $0x18] sm:$0xff]
      %v1699 = vld [vmem:[%s2 + $0x20] sm:$0xff]
      %v1700 = vld [vmem:[%s2 + $0x28] sm:$0xff]
      %v1701 = vld [vmem:[%s2 + $0x30] sm:$0xff]
      %v1702 = vld [vmem:[%s2 + $0x38] sm:$0xff]
      %1704 = vset.pattern.permute.xlu0 0
      %1705 = vperm.xlu0 %1704, %v1695
      %v1706 = vpop.permute.xlu0 %1705
      %1709 = vset.pattern.permute.xlu0 0
      %1710 = vperm.xlu0 %1709, %v1696
      %v1711 = vpop.permute.xlu0 %1710
      %1714 = vset.pattern.permute.xlu0 0
      %1715 = vperm.xlu0 %1714, %v1697
      %v1716 = vpop.permute.xlu0 %1715
      %1719 = vset.pattern.permute.xlu0 0
      %1720 = vperm.xlu0 %1719, %v1698
      %v1721 = vpop.permute.xlu0 %1720
      %1724 = vset.pattern.permute.xlu0 0
      %1725 = vperm.xlu0 %1724, %v1699
      %v1726 = vpop.permute.xlu0 %1725
      %1729 = vset.pattern.permute.xlu0 0
      %1730 = vperm.xlu0 %1729, %v1700
      %v1731 = vpop.permute.xlu0 %1730
      %1734 = vset.pattern.permute.xlu0 0
      %1735 = vperm.xlu0 %1734, %v1701
      %v1736 = vpop.permute.xlu0 %1735
      %1739 = vset.pattern.permute.xlu0 0
      %1740 = vperm.xlu0 %1739, %v1702
      %v1741 = vpop.permute.xlu0 %1740
      %v1743 = vadd.f32 %v1679, %v1706
      %v1744 = vadd.f32 %v1680, %v1706
      %v1745 = vadd.f32 %v1681, %v1711
      %v1746 = vadd.f32 %v1682, %v1711
      %v1747 = vadd.f32 %v1683, %v1716
      %v1748 = vadd.f32 %v1684, %v1716
      %v1749 = vadd.f32 %v1685, %v1721
      %v1750 = vadd.f32 %v1686, %v1721
      %v1751 = vadd.f32 %v1687, %v1726
      %v1752 = vadd.f32 %v1688, %v1726
      %v1753 = vadd.f32 %v1689, %v1731
      %v1754 = vadd.f32 %v1690, %v1731
      %v1755 = vadd.f32 %v1691, %v1736
      %v1756 = vadd.f32 %v1692, %v1736
      %v1757 = vadd.f32 %v1693, %v1741
      %v1758 = vadd.f32 %v1694, %v1741
      %v1759 = vmax.f32 %v1743, 0.0
      %v1760 = vmax.f32 %v1744, 0.0
      %v1761 = vmax.f32 %v1745, 0.0
      %v1762 = vmax.f32 %v1746, 0.0
      %v1763 = vmax.f32 %v1747, 0.0
      %v1764 = vmax.f32 %v1748, 0.0
      %v1765 = vmax.f32 %v1749, 0.0
      %v1766 = vmax.f32 %v1750, 0.0
      %v1767 = vmax.f32 %v1751, 0.0
      %v1768 = vmax.f32 %v1752, 0.0
      %v1769 = vmax.f32 %v1753, 0.0
      %v1770 = vmax.f32 %v1754, 0.0
      %v1771 = vmax.f32 %v1755, 0.0
      %v1772 = vmax.f32 %v1756, 0.0
      %v1773 = vmax.f32 %v1757, 0.0
      %v1774 = vmax.f32 %v1758, 0.0
      %v1775 = vpack.c.bf16 %v1761, %v1759
      %v1776 = vpack.c.bf16 %v1762, %v1760
      %v1777 = vpack.c.bf16 %v1765, %v1763
      %v1778 = vpack.c.bf16 %v1766, %v1764
      %v1779 = vpack.c.bf16 %v1769, %v1767
      %v1780 = vpack.c.bf16 %v1770, %v1768
      %v1781 = vpack.c.bf16 %v1773, %v1771
      %v1782 = vpack.c.bf16 %v1774, %v1772
      %1791 = vrot.lane.b32.xlu0 %v1775, 17
      %v1792 = vpop.permute.xlu0 %1791
      %1793 = vrot.lane.b32.xlu0 %v1776, 17
      %v1794 = vpop.permute.xlu0 %1793
      %1795 = vrot.lane.b32.xlu0 %v1777, 17
      %v1796 = vpop.permute.xlu0 %1795
      %1797 = vrot.lane.b32.xlu0 %v1778, 17
      %v1798 = vpop.permute.xlu0 %1797
      %1799 = vrot.lane.b32.xlu0 %v1779, 17
      %v1800 = vpop.permute.xlu0 %1799
      %1801 = vrot.lane.b32.xlu0 %v1780, 17
      %v1802 = vpop.permute.xlu0 %1801
      %1803 = vrot.lane.b32.xlu0 %v1781, 17
      %v1804 = vpop.permute.xlu0 %1803
      %1805 = vrot.lane.b32.xlu0 %v1782, 17
      %v1806 = vpop.permute.xlu0 %1805
      %v1807 = vsel %vm380, %v1792, %v1794
      %v1808 = vsel %vm380, %v1796, %v1798
      %v1809 = vsel %vm380, %v1800, %v1802
      %v1810 = vsel %vm380, %v1804, %v1806
      %v1816 = vsel %vm385, 0, %v1792
      %v1819 = vsel %vm385, 0, %v1796
      %v1822 = vsel %vm385, 0, %v1800
      %v1825 = vsel %vm385, 0, %v1804
      %v1827 = vmul.bf16 %v1816, %v322
      %v1828 = vmul.bf16 %v1807, %v329
      %v1829 = vmul.bf16 %v1819, %v322
      %v1830 = vmul.bf16 %v1808, %v329
      %v1831 = vmul.bf16 %v1822, %v322
      %v1832 = vmul.bf16 %v1809, %v329
      %v1833 = vmul.bf16 %v1825, %v322
      %v1834 = vmul.bf16 %v1810, %v329
      %v1835 = vld [vmem:[%s3] sm:$0xf]
      %1836 = vrot.lane.b32.xlu0 %v1775, 16
      %v1837 = vpop.permute.xlu0 %1836
      %1838 = vrot.lane.b32.xlu0 %v1776, 16
      %v1839 = vpop.permute.xlu0 %1838
      %1840 = vrot.lane.b32.xlu0 %v1777, 16
      %v1841 = vpop.permute.xlu0 %1840
      %1842 = vrot.lane.b32.xlu0 %v1778, 16
      %v1843 = vpop.permute.xlu0 %1842
      %1844 = vrot.lane.b32.xlu0 %v1779, 16
      %v1845 = vpop.permute.xlu0 %1844
      %1846 = vrot.lane.b32.xlu0 %v1780, 16
      %v1847 = vpop.permute.xlu0 %1846
      %1848 = vrot.lane.b32.xlu0 %v1781, 16
      %v1849 = vpop.permute.xlu0 %1848
      %1850 = vrot.lane.b32.xlu0 %v1782, 16
      %v1851 = vpop.permute.xlu0 %1850
      %v1852 = vsel %vm413, %v1837, %v1839
      %v1853 = vsel %vm413, %v1841, %v1843
      %v1854 = vsel %vm413, %v1845, %v1847
      %v1855 = vsel %vm413, %v1849, %v1851
      %v1861 = vsel %vm418, 0, %v1837
      %v1864 = vsel %vm418, 0, %v1841
      %v1867 = vsel %vm418, 0, %v1845
      %v1870 = vsel %vm418, 0, %v1849
      %s1872 = scalar_lea.vmem %s3, 4
      %v1873 = vld [vmem:[%s1872] sm:$0xf]
      %vm1874 = vcmask 523264
      %v1876 = vsel %vm1874, %v1873, 0
      %1878 = vmatprep.subr.bf16.mxu0 0
      %1879 = vmatpush1.bf16.msra.mxu0 0
      %1880 = vmatprep.subr.bf16.mxu0 0
      %1881 = vmatpush1.bf16.msra.mxu0 0
      %1882 = vmatprep.subr.bf16.mxu0 0
      %1883 = vmatpush1.bf16.msra.mxu0 0
      %1884 = vmatprep.subr.bf16.mxu0 0
      %1885 = vmatpush1.bf16.msra.mxu0 0
      %1886 = vmatprep.subr.bf16.mxu0 %v1855
      %1887 = vmatpush1.bf16.msra.mxu0 %v1870
      %1888 = vmatprep.subr.bf16.mxu0 %v1854
      %1889 = vmatpush1.bf16.msra.mxu0 %v1867
      %1890 = vmatprep.subr.bf16.mxu0 %v1853
      %1891 = vmatpush1.bf16.msra.mxu0 %v1864
      %1892 = vmatprep.subr.bf16.mxu0 %v1852
      %1893 = vmatpush1.bf16.msra.mxu0 %v1861
      %1894 = vmatprep.subr.bf16.mxu0 0
      %1895 = vmatpush2.bf16.msra.mxu0 0
      %1896 = vmatprep.subr.bf16.mxu0 0
      %1897 = vmatpush2.bf16.msra.mxu0 0
      %1898 = vmatprep.subr.bf16.mxu0 0
      %1899 = vmatpush2.bf16.msra.mxu0 0
      %1900 = vmatprep.subr.bf16.mxu0 0
      %1901 = vmatpush2.bf16.msra.mxu0 0
      %1902 = vmatprep.subr.bf16.mxu0 0
      %1903 = vmatpush2.bf16.msra.mxu0 0
      %1904 = vmatprep.subr.bf16.mxu0 0
      %1905 = vmatpush2.bf16.msra.mxu0 0
      %1906 = vmatprep.subr.bf16.mxu0 0
      %1907 = vmatpush2.bf16.msra.mxu0 0
      %1908 = vmatprep.subr.bf16.mxu0 0
      %1909 = vmatpush2.bf16.msra.mxu0 0
      %1910 = vmatprep.mubr.bf16.mxu0 0
      %1911 = vmatmul.mubr.bf16.gmra.mxu0 %v1876
      %v1912 = vpop.f32.mrf.mxu0
      %v1913 = vadd.f32 0.0, %v1912
      %v1914 = vpop.f32.mrf.mxu0
      %v1915 = vadd.f32 0.0, %v1914
      %v1916 = vpop.f32.mrf.mxu0
      %v1917 = vpop.f32.mrf.mxu0
      %1918 = vdwg.mxu0
      %v1920 = vsel %vm1874, %v1835, 0
      %1922 = vmatprep.subr.bf16.mxu0 0
      %1923 = vmatpush1.bf16.msra.mxu0 0
      %1924 = vmatprep.subr.bf16.mxu0 0
      %1925 = vmatpush1.bf16.msra.mxu0 0
      %1926 = vmatprep.subr.bf16.mxu0 0
      %1927 = vmatpush1.bf16.msra.mxu0 0
      %1928 = vmatprep.subr.bf16.mxu0 0
      %1929 = vmatpush1.bf16.msra.mxu0 0
      %1930 = vmatprep.subr.bf16.mxu0 %v1834
      %1931 = vmatpush1.bf16.msra.mxu0 %v1833
      %1932 = vmatprep.subr.bf16.mxu0 %v1832
      %1933 = vmatpush1.bf16.msra.mxu0 %v1831
      %1934 = vmatprep.subr.bf16.mxu0 %v1830
      %1935 = vmatpush1.bf16.msra.mxu0 %v1829
      %1936 = vmatprep.subr.bf16.mxu0 %v1828
      %1937 = vmatpush1.bf16.msra.mxu0 %v1827
      %1938 = vmatprep.subr.bf16.mxu0 0
      %1939 = vmatpush2.bf16.msra.mxu0 0
      %1940 = vmatprep.subr.bf16.mxu0 0
      %1941 = vmatpush2.bf16.msra.mxu0 0
      %1942 = vmatprep.subr.bf16.mxu0 0
      %1943 = vmatpush2.bf16.msra.mxu0 0
      %1944 = vmatprep.subr.bf16.mxu0 0
      %1945 = vmatpush2.bf16.msra.mxu0 0
      %1946 = vmatprep.subr.bf16.mxu0 0
      %1947 = vmatpush2.bf16.msra.mxu0 0
      %1948 = vmatprep.subr.bf16.mxu0 0
      %1949 = vmatpush2.bf16.msra.mxu0 0
      %1950 = vmatprep.subr.bf16.mxu0 0
      %1951 = vmatpush2.bf16.msra.mxu0 0
      %1952 = vmatprep.subr.bf16.mxu0 0
      %1953 = vmatpush2.bf16.msra.mxu0 0
      %1954 = vmatprep.mubr.bf16.mxu0 0
      %1955 = vmatmul.mubr.bf16.gmra.mxu0 %v1920
      %v1956 = vpop.f32.mrf.mxu0
      %v1957 = vadd.f32 %v1913, %v1956
      %v1958 = vpop.f32.mrf.mxu0
      %v1959 = vadd.f32 %v1915, %v1958
      %v1960 = vpop.f32.mrf.mxu0
      %v1961 = vpop.f32.mrf.mxu0
      %1962 = vdwg.mxu0
      %1963 = vrot.lane.b32.xlu0 %v1775, 15
      %v1964 = vpop.permute.xlu0 %1963
      %1965 = vrot.lane.b32.xlu0 %v1776, 15
      %v1966 = vpop.permute.xlu0 %1965
      %1967 = vrot.lane.b32.xlu0 %v1777, 15
      %v1968 = vpop.permute.xlu0 %1967
      %1969 = vrot.lane.b32.xlu0 %v1778, 15
      %v1970 = vpop.permute.xlu0 %1969
      %1971 = vrot.lane.b32.xlu0 %v1779, 15
      %v1972 = vpop.permute.xlu0 %1971
      %1973 = vrot.lane.b32.xlu0 %v1780, 15
      %v1974 = vpop.permute.xlu0 %1973
      %1975 = vrot.lane.b32.xlu0 %v1781, 15
      %v1976 = vpop.permute.xlu0 %1975
      %1977 = vrot.lane.b32.xlu0 %v1782, 15
      %v1978 = vpop.permute.xlu0 %1977
      %v1979 = vsel %vm653, %v1964, %v1966
      %v1980 = vsel %vm653, %v1968, %v1970
      %v1981 = vsel %vm653, %v1972, %v1974
      %v1982 = vsel %vm653, %v1976, %v1978
      %v1988 = vsel %vm658, 0, %v1964
      %v1991 = vsel %vm658, 0, %v1968
      %v1994 = vsel %vm658, 0, %v1972
      %v1997 = vsel %vm658, 0, %v1976
      %v1999 = vmul.bf16 %v1988, %v360
      %v2000 = vmul.bf16 %v1979, %v367
      %v2001 = vmul.bf16 %v1991, %v360
      %v2002 = vmul.bf16 %v1980, %v367
      %v2003 = vmul.bf16 %v1994, %v360
      %v2004 = vmul.bf16 %v1981, %v367
      %v2005 = vmul.bf16 %v1997, %v360
      %v2006 = vmul.bf16 %v1982, %v367
      %s2007 = scalar_lea.vmem %s3, 8
      %v2008 = vld [vmem:[%s2007] sm:$0xf]
      %v2010 = vsel %vm1874, %v2008, 0
      %2012 = vmatprep.subr.bf16.mxu0 0
      %2013 = vmatpush1.bf16.msra.mxu0 0
      %2014 = vmatprep.subr.bf16.mxu0 0
      %2015 = vmatpush1.bf16.msra.mxu0 0
      %2016 = vmatprep.subr.bf16.mxu0 0
      %2017 = vmatpush1.bf16.msra.mxu0 0
      %2018 = vmatprep.subr.bf16.mxu0 0
      %2019 = vmatpush1.bf16.msra.mxu0 0
      %2020 = vmatprep.subr.bf16.mxu0 %v2006
      %2021 = vmatpush1.bf16.msra.mxu0 %v2005
      %2022 = vmatprep.subr.bf16.mxu0 %v2004
      %2023 = vmatpush1.bf16.msra.mxu0 %v2003
      %2024 = vmatprep.subr.bf16.mxu0 %v2002
      %2025 = vmatpush1.bf16.msra.mxu0 %v2001
      %2026 = vmatprep.subr.bf16.mxu0 %v2000
      %2027 = vmatpush1.bf16.msra.mxu0 %v1999
      %2028 = vmatprep.subr.bf16.mxu0 0
      %2029 = vmatpush2.bf16.msra.mxu0 0
      %2030 = vmatprep.subr.bf16.mxu0 0
      %2031 = vmatpush2.bf16.msra.mxu0 0
      %2032 = vmatprep.subr.bf16.mxu0 0
      %2033 = vmatpush2.bf16.msra.mxu0 0
      %2034 = vmatprep.subr.bf16.mxu0 0
      %2035 = vmatpush2.bf16.msra.mxu0 0
      %2036 = vmatprep.subr.bf16.mxu0 0
      %2037 = vmatpush2.bf16.msra.mxu0 0
      %2038 = vmatprep.subr.bf16.mxu0 0
      %2039 = vmatpush2.bf16.msra.mxu0 0
      %2040 = vmatprep.subr.bf16.mxu0 0
      %2041 = vmatpush2.bf16.msra.mxu0 0
      %2042 = vmatprep.subr.bf16.mxu0 0
      %2043 = vmatpush2.bf16.msra.mxu0 0
      %2044 = vmatprep.mubr.bf16.mxu0 0
      %2045 = vmatmul.mubr.bf16.gmra.mxu0 %v2010
      %v2046 = vpop.f32.mrf.mxu0
      %v2047 = vadd.f32 0.0, %v2046
      %v2048 = vpop.f32.mrf.mxu0
      %v2049 = vadd.f32 0.0, %v2048
      %v2050 = vpop.f32.mrf.mxu0
      %v2051 = vpop.f32.mrf.mxu0
      %2052 = vdwg.mxu0
      %v2053 = vadd.f32 %v1957, %v2047
      %v2054 = vadd.f32 %v1959, %v2049
      %2055 = vrot.lane.b32.xlu0 %v1775, 1
      %v2056 = vpop.permute.xlu0 %2055
      %2057 = vrot.lane.b32.xlu0 %v1776, 1
      %v2058 = vpop.permute.xlu0 %2057
      %2059 = vrot.lane.b32.xlu0 %v1777, 1
      %v2060 = vpop.permute.xlu0 %2059
      %2061 = vrot.lane.b32.xlu0 %v1778, 1
      %v2062 = vpop.permute.xlu0 %2061
      %2063 = vrot.lane.b32.xlu0 %v1779, 1
      %v2064 = vpop.permute.xlu0 %2063
      %2065 = vrot.lane.b32.xlu0 %v1780, 1
      %v2066 = vpop.permute.xlu0 %2065
      %2067 = vrot.lane.b32.xlu0 %v1781, 1
      %v2068 = vpop.permute.xlu0 %2067
      %2069 = vrot.lane.b32.xlu0 %v1782, 1
      %v2070 = vpop.permute.xlu0 %2069
      %v2071 = vsel %vm807, %v2056, %v2058
      %v2072 = vsel %vm807, %v2060, %v2062
      %v2073 = vsel %vm807, %v2064, %v2066
      %v2074 = vsel %vm807, %v2068, %v2070
      %v2080 = vsel %vm812, 0, %v2056
      %v2083 = vsel %vm812, 0, %v2060
      %v2086 = vsel %vm812, 0, %v2064
      %v2089 = vsel %vm812, 0, %v2068
      %v2091 = vmul.bf16 %v2080, %v322
      %v2092 = vmul.bf16 %v2071, %v329
      %v2093 = vmul.bf16 %v2083, %v322
      %v2094 = vmul.bf16 %v2072, %v329
      %v2095 = vmul.bf16 %v2086, %v322
      %v2096 = vmul.bf16 %v2073, %v329
      %v2097 = vmul.bf16 %v2089, %v322
      %v2098 = vmul.bf16 %v2074, %v329
      %s2099 = scalar_lea.vmem %s3, 12
      %v2100 = vld [vmem:[%s2099] sm:$0xf]
      %v2102 = vsel %vm1874, %v2100, 0
      %2104 = vmatprep.subr.bf16.mxu0 0
      %2105 = vmatpush1.bf16.msra.mxu0 0
      %2106 = vmatprep.subr.bf16.mxu0 0
      %2107 = vmatpush1.bf16.msra.mxu0 0
      %2108 = vmatprep.subr.bf16.mxu0 0
      %2109 = vmatpush1.bf16.msra.mxu0 0
      %2110 = vmatprep.subr.bf16.mxu0 0
      %2111 = vmatpush1.bf16.msra.mxu0 0
      %2112 = vmatprep.subr.bf16.mxu0 %v2098
      %2113 = vmatpush1.bf16.msra.mxu0 %v2097
      %2114 = vmatprep.subr.bf16.mxu0 %v2096
      %2115 = vmatpush1.bf16.msra.mxu0 %v2095
      %2116 = vmatprep.subr.bf16.mxu0 %v2094
      %2117 = vmatpush1.bf16.msra.mxu0 %v2093
      %2118 = vmatprep.subr.bf16.mxu0 %v2092
      %2119 = vmatpush1.bf16.msra.mxu0 %v2091
      %2120 = vmatprep.subr.bf16.mxu0 0
      %2121 = vmatpush2.bf16.msra.mxu0 0
      %2122 = vmatprep.subr.bf16.mxu0 0
      %2123 = vmatpush2.bf16.msra.mxu0 0
      %2124 = vmatprep.subr.bf16.mxu0 0
      %2125 = vmatpush2.bf16.msra.mxu0 0
      %2126 = vmatprep.subr.bf16.mxu0 0
      %2127 = vmatpush2.bf16.msra.mxu0 0
      %2128 = vmatprep.subr.bf16.mxu0 0
      %2129 = vmatpush2.bf16.msra.mxu0 0
      %2130 = vmatprep.subr.bf16.mxu0 0
      %2131 = vmatpush2.bf16.msra.mxu0 0
      %2132 = vmatprep.subr.bf16.mxu0 0
      %2133 = vmatpush2.bf16.msra.mxu0 0
      %2134 = vmatprep.subr.bf16.mxu0 0
      %2135 = vmatpush2.bf16.msra.mxu0 0
      %2136 = vmatprep.mubr.bf16.mxu0 0
      %2137 = vmatmul.mubr.bf16.gmra.mxu0 %v2102
      %v2138 = vpop.f32.mrf.mxu0
      %v2139 = vadd.f32 0.0, %v2138
      %v2140 = vpop.f32.mrf.mxu0
      %v2141 = vadd.f32 0.0, %v2140
      %v2142 = vpop.f32.mrf.mxu0
      %v2143 = vpop.f32.mrf.mxu0
      %2144 = vdwg.mxu0
      %v2145 = vadd.f32 %v2053, %v2139
      %v2146 = vadd.f32 %v2054, %v2141
      %s2147 = scalar_lea.vmem %s3, 16
      %v2148 = vld [vmem:[%s2147] sm:$0xf]
      %v2150 = vsel %vm1874, %v2148, 0
      %2152 = vmatprep.subr.bf16.mxu0 0
      %2153 = vmatpush1.bf16.msra.mxu0 0
      %2154 = vmatprep.subr.bf16.mxu0 0
      %2155 = vmatpush1.bf16.msra.mxu0 0
      %2156 = vmatprep.subr.bf16.mxu0 0
      %2157 = vmatpush1.bf16.msra.mxu0 0
      %2158 = vmatprep.subr.bf16.mxu0 0
      %2159 = vmatpush1.bf16.msra.mxu0 0
      %2160 = vmatprep.subr.bf16.mxu0 %v1782
      %2161 = vmatpush1.bf16.msra.mxu0 %v1781
      %2162 = vmatprep.subr.bf16.mxu0 %v1780
      %2163 = vmatpush1.bf16.msra.mxu0 %v1779
      %2164 = vmatprep.subr.bf16.mxu0 %v1778
      %2165 = vmatpush1.bf16.msra.mxu0 %v1777
      %2166 = vmatprep.subr.bf16.mxu0 %v1776
      %2167 = vmatpush1.bf16.msra.mxu0 %v1775
      %2168 = vmatprep.subr.bf16.mxu0 0
      %2169 = vmatpush2.bf16.msra.mxu0 0
      %2170 = vmatprep.subr.bf16.mxu0 0
      %2171 = vmatpush2.bf16.msra.mxu0 0
      %2172 = vmatprep.subr.bf16.mxu0 0
      %2173 = vmatpush2.bf16.msra.mxu0 0
      %2174 = vmatprep.subr.bf16.mxu0 0
      %2175 = vmatpush2.bf16.msra.mxu0 0
      %2176 = vmatprep.subr.bf16.mxu0 0
      %2177 = vmatpush2.bf16.msra.mxu0 0
      %2178 = vmatprep.subr.bf16.mxu0 0
      %2179 = vmatpush2.bf16.msra.mxu0 0
      %2180 = vmatprep.subr.bf16.mxu0 0
      %2181 = vmatpush2.bf16.msra.mxu0 0
      %2182 = vmatprep.subr.bf16.mxu0 0
      %2183 = vmatpush2.bf16.msra.mxu0 0
      %2184 = vmatprep.mubr.bf16.mxu0 0
      %2185 = vmatmul.mubr.bf16.gmra.mxu0 %v2150
      %v2186 = vpop.f32.mrf.mxu0
      %v2187 = vadd.f32 0.0, %v2186
      %v2188 = vpop.f32.mrf.mxu0
      %v2189 = vadd.f32 0.0, %v2188
      %v2190 = vpop.f32.mrf.mxu0
      %v2191 = vpop.f32.mrf.mxu0
      %2192 = vdwg.mxu0
      %v2193 = vadd.f32 %v2145, %v2187
      %v2194 = vadd.f32 %v2146, %v2189
      %2195 = vrot.lane.b32.xlu0 %v1775, 127
      %v2196 = vpop.permute.xlu0 %2195
      %2197 = vrot.lane.b32.xlu0 %v1776, 127
      %v2198 = vpop.permute.xlu0 %2197
      %2199 = vrot.lane.b32.xlu0 %v1777, 127
      %v2200 = vpop.permute.xlu0 %2199
      %2201 = vrot.lane.b32.xlu0 %v1778, 127
      %v2202 = vpop.permute.xlu0 %2201
      %2203 = vrot.lane.b32.xlu0 %v1779, 127
      %v2204 = vpop.permute.xlu0 %2203
      %2205 = vrot.lane.b32.xlu0 %v1780, 127
      %v2206 = vpop.permute.xlu0 %2205
      %2207 = vrot.lane.b32.xlu0 %v1781, 127
      %v2208 = vpop.permute.xlu0 %2207
      %2209 = vrot.lane.b32.xlu0 %v1782, 127
      %v2210 = vpop.permute.xlu0 %2209
      %v2211 = vsel %vm1091, %v2196, %v2198
      %v2212 = vsel %vm1091, %v2200, %v2202
      %v2213 = vsel %vm1091, %v2204, %v2206
      %v2214 = vsel %vm1091, %v2208, %v2210
      %v2220 = vsel %vm1096, %v2198, 0
      %v2223 = vsel %vm1096, %v2202, 0
      %v2226 = vsel %vm1096, %v2206, 0
      %v2229 = vsel %vm1096, %v2210, 0
      %v2231 = vmul.bf16 %v2211, %v360
      %v2232 = vmul.bf16 %v2220, %v367
      %v2233 = vmul.bf16 %v2212, %v360
      %v2234 = vmul.bf16 %v2223, %v367
      %v2235 = vmul.bf16 %v2213, %v360
      %v2236 = vmul.bf16 %v2226, %v367
      %v2237 = vmul.bf16 %v2214, %v360
      %v2238 = vmul.bf16 %v2229, %v367
      %s2239 = scalar_lea.vmem %s3, 20
      %v2240 = vld [vmem:[%s2239] sm:$0xf]
      %v2242 = vsel %vm1874, %v2240, 0
      %2244 = vmatprep.subr.bf16.mxu0 0
      %2245 = vmatpush1.bf16.msra.mxu0 0
      %2246 = vmatprep.subr.bf16.mxu0 0
      %2247 = vmatpush1.bf16.msra.mxu0 0
      %2248 = vmatprep.subr.bf16.mxu0 0
      %2249 = vmatpush1.bf16.msra.mxu0 0
      %2250 = vmatprep.subr.bf16.mxu0 0
      %2251 = vmatpush1.bf16.msra.mxu0 0
      %2252 = vmatprep.subr.bf16.mxu0 %v2238
      %2253 = vmatpush1.bf16.msra.mxu0 %v2237
      %2254 = vmatprep.subr.bf16.mxu0 %v2236
      %2255 = vmatpush1.bf16.msra.mxu0 %v2235
      %2256 = vmatprep.subr.bf16.mxu0 %v2234
      %2257 = vmatpush1.bf16.msra.mxu0 %v2233
      %2258 = vmatprep.subr.bf16.mxu0 %v2232
      %2259 = vmatpush1.bf16.msra.mxu0 %v2231
      %2260 = vmatprep.subr.bf16.mxu0 0
      %2261 = vmatpush2.bf16.msra.mxu0 0
      %2262 = vmatprep.subr.bf16.mxu0 0
      %2263 = vmatpush2.bf16.msra.mxu0 0
      %2264 = vmatprep.subr.bf16.mxu0 0
      %2265 = vmatpush2.bf16.msra.mxu0 0
      %2266 = vmatprep.subr.bf16.mxu0 0
      %2267 = vmatpush2.bf16.msra.mxu0 0
      %2268 = vmatprep.subr.bf16.mxu0 0
      %2269 = vmatpush2.bf16.msra.mxu0 0
      %2270 = vmatprep.subr.bf16.mxu0 0
      %2271 = vmatpush2.bf16.msra.mxu0 0
      %2272 = vmatprep.subr.bf16.mxu0 0
      %2273 = vmatpush2.bf16.msra.mxu0 0
      %2274 = vmatprep.subr.bf16.mxu0 0
      %2275 = vmatpush2.bf16.msra.mxu0 0
      %2276 = vmatprep.mubr.bf16.mxu0 0
      %2277 = vmatmul.mubr.bf16.gmra.mxu0 %v2242
      %v2278 = vpop.f32.mrf.mxu0
      %v2279 = vadd.f32 0.0, %v2278
      %v2280 = vpop.f32.mrf.mxu0
      %v2281 = vadd.f32 0.0, %v2280
      %v2282 = vpop.f32.mrf.mxu0
      %v2283 = vpop.f32.mrf.mxu0
      %2284 = vdwg.mxu0
      %v2285 = vadd.f32 %v2193, %v2279
      %v2286 = vadd.f32 %v2194, %v2281
      %2287 = vrot.lane.b32.xlu0 %v1775, 113
      %v2288 = vpop.permute.xlu0 %2287
      %2289 = vrot.lane.b32.xlu0 %v1776, 113
      %v2290 = vpop.permute.xlu0 %2289
      %2291 = vrot.lane.b32.xlu0 %v1777, 113
      %v2292 = vpop.permute.xlu0 %2291
      %2293 = vrot.lane.b32.xlu0 %v1778, 113
      %v2294 = vpop.permute.xlu0 %2293
      %2295 = vrot.lane.b32.xlu0 %v1779, 113
      %v2296 = vpop.permute.xlu0 %2295
      %2297 = vrot.lane.b32.xlu0 %v1780, 113
      %v2298 = vpop.permute.xlu0 %2297
      %2299 = vrot.lane.b32.xlu0 %v1781, 113
      %v2300 = vpop.permute.xlu0 %2299
      %2301 = vrot.lane.b32.xlu0 %v1782, 113
      %v2302 = vpop.permute.xlu0 %2301
      %v2303 = vsel %vm1245, %v2288, %v2290
      %v2304 = vsel %vm1245, %v2292, %v2294
      %v2305 = vsel %vm1245, %v2296, %v2298
      %v2306 = vsel %vm1245, %v2300, %v2302
      %v2312 = vsel %vm1250, %v2290, 0
      %v2315 = vsel %vm1250, %v2294, 0
      %v2318 = vsel %vm1250, %v2298, 0
      %v2321 = vsel %vm1250, %v2302, 0
      %v2323 = vmul.bf16 %v2303, %v322
      %v2324 = vmul.bf16 %v2312, %v329
      %v2325 = vmul.bf16 %v2304, %v322
      %v2326 = vmul.bf16 %v2315, %v329
      %v2327 = vmul.bf16 %v2305, %v322
      %v2328 = vmul.bf16 %v2318, %v329
      %v2329 = vmul.bf16 %v2306, %v322
      %v2330 = vmul.bf16 %v2321, %v329
      %s2331 = scalar_lea.vmem %s3, 24
      %v2332 = vld [vmem:[%s2331] sm:$0xf]
      %v2334 = vsel %vm1874, %v2332, 0
      %2336 = vmatprep.subr.bf16.mxu0 0
      %2337 = vmatpush1.bf16.msra.mxu0 0
      %2338 = vmatprep.subr.bf16.mxu0 0
      %2339 = vmatpush1.bf16.msra.mxu0 0
      %2340 = vmatprep.subr.bf16.mxu0 0
      %2341 = vmatpush1.bf16.msra.mxu0 0
      %2342 = vmatprep.subr.bf16.mxu0 0
      %2343 = vmatpush1.bf16.msra.mxu0 0
      %2344 = vmatprep.subr.bf16.mxu0 %v2330
      %2345 = vmatpush1.bf16.msra.mxu0 %v2329
      %2346 = vmatprep.subr.bf16.mxu0 %v2328
      %2347 = vmatpush1.bf16.msra.mxu0 %v2327
      %2348 = vmatprep.subr.bf16.mxu0 %v2326
      %2349 = vmatpush1.bf16.msra.mxu0 %v2325
      %2350 = vmatprep.subr.bf16.mxu0 %v2324
      %2351 = vmatpush1.bf16.msra.mxu0 %v2323
      %2352 = vmatprep.subr.bf16.mxu0 0
      %2353 = vmatpush2.bf16.msra.mxu0 0
      %2354 = vmatprep.subr.bf16.mxu0 0
      %2355 = vmatpush2.bf16.msra.mxu0 0
      %2356 = vmatprep.subr.bf16.mxu0 0
      %2357 = vmatpush2.bf16.msra.mxu0 0
      %2358 = vmatprep.subr.bf16.mxu0 0
      %2359 = vmatpush2.bf16.msra.mxu0 0
      %2360 = vmatprep.subr.bf16.mxu0 0
      %2361 = vmatpush2.bf16.msra.mxu0 0
      %2362 = vmatprep.subr.bf16.mxu0 0
      %2363 = vmatpush2.bf16.msra.mxu0 0
      %2364 = vmatprep.subr.bf16.mxu0 0
      %2365 = vmatpush2.bf16.msra.mxu0 0
      %2366 = vmatprep.subr.bf16.mxu0 0
      %2367 = vmatpush2.bf16.msra.mxu0 0
      %2368 = vmatprep.mubr.bf16.mxu0 0
      %2369 = vmatmul.mubr.bf16.gmra.mxu0 %v2334
      %v2370 = vpop.f32.mrf.mxu0
      %v2371 = vadd.f32 0.0, %v2370
      %v2372 = vpop.f32.mrf.mxu0
      %v2373 = vadd.f32 0.0, %v2372
      %v2374 = vpop.f32.mrf.mxu0
      %v2375 = vpop.f32.mrf.mxu0
      %2376 = vdwg.mxu0
      %v2377 = vadd.f32 %v2285, %v2371
      %v2378 = vadd.f32 %v2286, %v2373
      %2379 = vrot.lane.b32.xlu0 %v1775, 112
      %v2380 = vpop.permute.xlu0 %2379
      %2381 = vrot.lane.b32.xlu0 %v1776, 112
      %v2382 = vpop.permute.xlu0 %2381
      %2383 = vrot.lane.b32.xlu0 %v1777, 112
      %v2384 = vpop.permute.xlu0 %2383
      %2385 = vrot.lane.b32.xlu0 %v1778, 112
      %v2386 = vpop.permute.xlu0 %2385
      %2387 = vrot.lane.b32.xlu0 %v1779, 112
      %v2388 = vpop.permute.xlu0 %2387
      %2389 = vrot.lane.b32.xlu0 %v1780, 112
      %v2390 = vpop.permute.xlu0 %2389
      %2391 = vrot.lane.b32.xlu0 %v1781, 112
      %v2392 = vpop.permute.xlu0 %2391
      %2393 = vrot.lane.b32.xlu0 %v1782, 112
      %v2394 = vpop.permute.xlu0 %2393
      %v2395 = vsel %vm1399, %v2380, %v2382
      %v2396 = vsel %vm1399, %v2384, %v2386
      %v2397 = vsel %vm1399, %v2388, %v2390
      %v2398 = vsel %vm1399, %v2392, %v2394
      %v2404 = vsel %vm1404, %v2382, 0
      %v2407 = vsel %vm1404, %v2386, 0
      %v2410 = vsel %vm1404, %v2390, 0
      %v2413 = vsel %vm1404, %v2394, 0
      %s2415 = scalar_lea.vmem %s3, 28
      %v2416 = vld [vmem:[%s2415] sm:$0xf]
      %v2418 = vsel %vm1874, %v2416, 0
      %2420 = vmatprep.subr.bf16.mxu0 0
      %2421 = vmatpush1.bf16.msra.mxu0 0
      %2422 = vmatprep.subr.bf16.mxu0 0
      %2423 = vmatpush1.bf16.msra.mxu0 0
      %2424 = vmatprep.subr.bf16.mxu0 0
      %2425 = vmatpush1.bf16.msra.mxu0 0
      %2426 = vmatprep.subr.bf16.mxu0 0
      %2427 = vmatpush1.bf16.msra.mxu0 0
      %2428 = vmatprep.subr.bf16.mxu0 %v2413
      %2429 = vmatpush1.bf16.msra.mxu0 %v2398
      %2430 = vmatprep.subr.bf16.mxu0 %v2410
      %2431 = vmatpush1.bf16.msra.mxu0 %v2397
      %2432 = vmatprep.subr.bf16.mxu0 %v2407
      %2433 = vmatpush1.bf16.msra.mxu0 %v2396
      %2434 = vmatprep.subr.bf16.mxu0 %v2404
      %2435 = vmatpush1.bf16.msra.mxu0 %v2395
      %2436 = vmatprep.subr.bf16.mxu0 0
      %2437 = vmatpush2.bf16.msra.mxu0 0
      %2438 = vmatprep.subr.bf16.mxu0 0
      %2439 = vmatpush2.bf16.msra.mxu0 0
      %2440 = vmatprep.subr.bf16.mxu0 0
      %2441 = vmatpush2.bf16.msra.mxu0 0
      %2442 = vmatprep.subr.bf16.mxu0 0
      %2443 = vmatpush2.bf16.msra.mxu0 0
      %2444 = vmatprep.subr.bf16.mxu0 0
      %2445 = vmatpush2.bf16.msra.mxu0 0
      %2446 = vmatprep.subr.bf16.mxu0 0
      %2447 = vmatpush2.bf16.msra.mxu0 0
      %2448 = vmatprep.subr.bf16.mxu0 0
      %2449 = vmatpush2.bf16.msra.mxu0 0
      %2450 = vmatprep.subr.bf16.mxu0 0
      %2451 = vmatpush2.bf16.msra.mxu0 0
      %2452 = vmatprep.mubr.bf16.mxu0 0
      %2453 = vmatmul.mubr.bf16.gmra.mxu0 %v2418
      %v2454 = vpop.f32.mrf.mxu0
      %v2455 = vadd.f32 0.0, %v2454
      %v2456 = vpop.f32.mrf.mxu0
      %v2457 = vadd.f32 0.0, %v2456
      %v2458 = vpop.f32.mrf.mxu0
      %v2459 = vpop.f32.mrf.mxu0
      %2460 = vdwg.mxu0
      %v2461 = vadd.f32 %v2377, %v2455
      %v2462 = vadd.f32 %v2378, %v2457
      %2463 = vrot.lane.b32.xlu0 %v1775, 111
      %v2464 = vpop.permute.xlu0 %2463
      %2465 = vrot.lane.b32.xlu0 %v1776, 111
      %v2466 = vpop.permute.xlu0 %2465
      %2467 = vrot.lane.b32.xlu0 %v1777, 111
      %v2468 = vpop.permute.xlu0 %2467
      %2469 = vrot.lane.b32.xlu0 %v1778, 111
      %v2470 = vpop.permute.xlu0 %2469
      %2471 = vrot.lane.b32.xlu0 %v1779, 111
      %v2472 = vpop.permute.xlu0 %2471
      %2473 = vrot.lane.b32.xlu0 %v1780, 111
      %v2474 = vpop.permute.xlu0 %2473
      %2475 = vrot.lane.b32.xlu0 %v1781, 111
      %v2476 = vpop.permute.xlu0 %2475
      %2477 = vrot.lane.b32.xlu0 %v1782, 111
      %v2478 = vpop.permute.xlu0 %2477
      %v2479 = vsel %vm1549, %v2464, %v2466
      %v2480 = vsel %vm1549, %v2468, %v2470
      %v2481 = vsel %vm1549, %v2472, %v2474
      %v2482 = vsel %vm1549, %v2476, %v2478
      %v2488 = vsel %vm1554, %v2466, 0
      %v2491 = vsel %vm1554, %v2470, 0
      %v2494 = vsel %vm1554, %v2474, 0
      %v2497 = vsel %vm1554, %v2478, 0
      %v2499 = vmul.bf16 %v2479, %v360
      %v2500 = vmul.bf16 %v2488, %v367
      %v2501 = vmul.bf16 %v2480, %v360
      %v2502 = vmul.bf16 %v2491, %v367
      %v2503 = vmul.bf16 %v2481, %v360
      %v2504 = vmul.bf16 %v2494, %v367
      %v2505 = vmul.bf16 %v2482, %v360
      %v2506 = vmul.bf16 %v2497, %v367
      %s2507 = scalar_lea.vmem %s3, 32
      %v2508 = vld [vmem:[%s2507] sm:$0xf]
      %v2510 = vsel %vm1874, %v2508, 0
      %2512 = vmatprep.subr.bf16.mxu0 0
      %2513 = vmatpush1.bf16.msra.mxu0 0
      %2514 = vmatprep.subr.bf16.mxu0 0
      %2515 = vmatpush1.bf16.msra.mxu0 0
      %2516 = vmatprep.subr.bf16.mxu0 0
      %2517 = vmatpush1.bf16.msra.mxu0 0
      %2518 = vmatprep.subr.bf16.mxu0 0
      %2519 = vmatpush1.bf16.msra.mxu0 0
      %2520 = vmatprep.subr.bf16.mxu0 %v2506
      %2521 = vmatpush1.bf16.msra.mxu0 %v2505
      %2522 = vmatprep.subr.bf16.mxu0 %v2504
      %2523 = vmatpush1.bf16.msra.mxu0 %v2503
      %2524 = vmatprep.subr.bf16.mxu0 %v2502
      %2525 = vmatpush1.bf16.msra.mxu0 %v2501
      %2526 = vmatprep.subr.bf16.mxu0 %v2500
      %2527 = vmatpush1.bf16.msra.mxu0 %v2499
      %2528 = vmatprep.subr.bf16.mxu0 0
      %2529 = vmatpush2.bf16.msra.mxu0 0
      %2530 = vmatprep.subr.bf16.mxu0 0
      %2531 = vmatpush2.bf16.msra.mxu0 0
      %2532 = vmatprep.subr.bf16.mxu0 0
      %2533 = vmatpush2.bf16.msra.mxu0 0
      %2534 = vmatprep.subr.bf16.mxu0 0
      %2535 = vmatpush2.bf16.msra.mxu0 0
      %2536 = vmatprep.subr.bf16.mxu0 0
      %2537 = vmatpush2.bf16.msra.mxu0 0
      %2538 = vmatprep.subr.bf16.mxu0 0
      %2539 = vmatpush2.bf16.msra.mxu0 0
      %2540 = vmatprep.subr.bf16.mxu0 0
      %2541 = vmatpush2.bf16.msra.mxu0 0
      %2542 = vmatprep.subr.bf16.mxu0 0
      %2543 = vmatpush2.bf16.msra.mxu0 0
      %2544 = vmatprep.mubr.bf16.mxu0 0
      %2545 = vmatmul.mubr.bf16.gmra.mxu0 %v2510
      %v2546 = vpop.f32.mrf.mxu0
      %v2547 = vadd.f32 0.0, %v2546
      %v2548 = vpop.f32.mrf.mxu0
      %v2549 = vadd.f32 0.0, %v2548
      %v2550 = vpop.f32.mrf.mxu0
      %v2551 = vpop.f32.mrf.mxu0
      %2552 = vdwg.mxu0
      %v2553 = vadd.f32 %v2461, %v2547
      %v2554 = vadd.f32 %v2462, %v2549
      %v2555 = vld [vmem:[%s4] sm:$0xff]
      %2557 = vset.pattern.permute.xlu0 0
      %2558 = vperm.xlu0 %2557, %v2555
      %v2559 = vpop.permute.xlu0 %2558
      %v2561 = vadd.f32 %v2553, %v2559
      %v2562 = vadd.f32 %v2554, %v2559
      %2563 = vst [vmem:[%s278] sm:$0xff] %v2561
      %2564 = vst [vmem:[%s278 + $0x8] sm:$0xff] %v2562
      %p2565 = scmp.lt.s32.totalorder %s18, 1
      %s2566 = scalar_select %p2565, %s18, 1
      %s2567 = smul.addr %s2566, 2
      %s2568 = smul.addr %s2567, 8
      %s2569 = scalar_lea.vmem %s7, %s2568
      // Predicated region
      $region49: #{flow_head_pallas.1} parent=47 // pred_check
        %p2570 = pneg %p188
      $region50: #{flow_head_pallas.1} parent=47 // pred_check_branch
        %2572 = sbr.rel (%p2570) target = $region52
      $region51: #{flow_head_pallas.1} parent=47 // pred_region
        _
      $region52: #{flow_head_pallas.1} parent=47 // pred_fallthru
        _
    $region48: #{flow_head_pallas.1} parent=5 // pred_fallthru
      _
    %p2573 = scmp.le.s32.totalorder 2, %s13
    // Predicated region
    $region53: #{flow_head_pallas.1} parent=5 // pred_check
      %p2574 = pneg %p2573
    $region54: #{flow_head_pallas.1} parent=5 // pred_check_branch
      %2576 = sbr.rel (%p2574) target = $region56
    $region55: #{flow_head_pallas.1} parent=5 // pred_region
      %s2577 = ssub.s32 %s13, 2
      // Predicated region
      $region57: #{flow_head_pallas.1} parent=55 // pred_check
        %p2578 = pneg %p194
      $region58: #{flow_head_pallas.1} parent=55 // pred_check_branch
        %2580 = sbr.rel (%p2578) target = $region60
      $region59: #{flow_head_pallas.1} parent=55 // pred_region
        %p2581 = scmp.lt.s32.totalorder %s19, 1
        %s2582 = scalar_select %p2581, %s19, 1
        %s2583 = smul.addr %s2582, 2
        %s2584 = smul.addr %s2583, 8
        %s2585 = scalar_lea.vmem %s7, %s2584
      $region60: #{flow_head_pallas.1} parent=55 // pred_fallthru
        _
    $region56: #{flow_head_pallas.1} parent=5 // pred_fallthru
      _
  $region6: #{flow_head_pallas.1} parent=0 // loop_footer
    %s17 = sadd.s32 1, %s13
  $region7: #{flow_head_pallas.1} parent=0 // loop_footer_branch
    %12 = sbr.rel target = $region3
  $region8: #{flow_head_pallas.1} parent=0 // loop_exit
    _

</llo_original>
